<compile_context>
chip_gen: v6e
topology: v6e:2x2x1
jax: 0.10.0
libtpu: 0.0.40
codegen_flags: <defaults>
</compile_context>

<pallas_src>
import functools

import jax
import jax.numpy as jnp
from jax.experimental import pallas as pl
from jax.experimental.pallas import tpu as pltpu

K_IN = 28 * 28   # 784 (full last dim of x — no K padding needed)
HID = 128
N_OUT = 10
N_PAD = 128      # lane-dense fc2 output (pad 10 -> 128, slice in wrapper)


def mlp_kernel(x_ref, w1_ref, b1_ref, w2_ref, b2_ref, o_ref):
    # x_ref : (tile_b, 784) f32  (cast to bf16 here — fused into the kernel, no
    #                             extra HBM pass in the wrapper)
    # w1_ref: (784, 128)  bf16    b1_ref: (1, 128) f32
    # w2_ref: (128, 128)  bf16    b2_ref: (1, 128) f32
    # o_ref : (tile_b, 128) f32
    x = x_ref[...].astype(jnp.bfloat16)
    # fc1: bf16 MXU matmul, f32 accumulate; bias + ReLU on the f32 accumulator.
    h = jnp.dot(x, w1_ref[...], preferred_element_type=jnp.float32)
    h = jnp.maximum(h + b1_ref[...], 0.0)
    # fc2: cast activations to bf16 for the MXU, accumulate + bias in f32.
    logits = jnp.dot(h.astype(jnp.bfloat16), w2_ref[...],
                     preferred_element_type=jnp.float32)
    o_ref[...] = (logits + b2_ref[...]).astype(o_ref.dtype)


@functools.partial(jax.jit, static_argnames=("tile_b",))
def mlp_forward(x_nchw, w1, b1, w2, b2, *, tile_b=1024):
    """x_nchw: (B, 1, 28, 28) f32 -> logits (B, 10) f32.

    w1: (784, 128), b1: (1, 128), w2: (128, 10), b2: (1, 10) — all f32.
    Weights are cast to bf16 / padded here (tiny, one-time per call); the large
    x stream is NOT copied — it goes to the kernel as f32 and is cast on-tile.
    """
    B = x_nchw.shape[0]
    x = x_nchw.reshape(B, -1)                      # (B, 784) — same as torch .view(B, -1)

    # ---- pick the effective batch tile (all static at trace time) ----------
    # Round batch to a 256 multiple (covers v5e's 128-row MXU, keeps layout
    # sublane-aligned), cap at tile_b, and when the batch is big enough keep at
    # least 2 grid steps so v7x's two TensorCores both get work.
    b_al = pl.cdiv(B, 256) * 256
    eff_tile = min(tile_b, b_al)
    if b_al > 256 and b_al // eff_tile == 1:
        eff_tile = max(256, b_al // 2)
    b_pad = pl.cdiv(B, eff_tile) * eff_tile
    num_tiles = b_pad // eff_tile

    # Batch padding only (no dtype/K padding of x).  When B is already a
    # multiple of eff_tile this pad is a no-op and XLA elides it.
    x_p = jnp.pad(x, ((0, b_pad - B), (0, 0))) if b_pad != B else x

    # Small, VMEM-resident operands: bf16 weights, f32 biases, lane-dense fc2.
    w1_b = w1.astype(jnp.bfloat16)                                   # (784, 128)
    b1_r = b1.reshape(1, HID).astype(jnp.float32)                    # (1, 128)
    w2_p = jnp.pad(w2.astype(jnp.bfloat16), ((0, 0), (0, N_PAD - N_OUT)))  # (128, 128)
    b2_p = jnp.pad(b2.reshape(1, N_OUT).astype(jnp.float32),
                   ((0, 0), (0, N_PAD - N_OUT)))                     # (1, 128)

    in_specs = [
        pl.BlockSpec((eff_tile, K_IN), lambda i: (i, 0)),  # x: streamed per batch tile
        pl.BlockSpec((K_IN, HID), lambda i: (0, 0)),       # w1: VMEM-resident
        pl.BlockSpec((1, HID), lambda i: (0, 0)),          # b1: VMEM-resident
        pl.BlockSpec((HID, N_PAD), lambda i: (0, 0)),      # w2: VMEM-resident
        pl.BlockSpec((1, N_PAD), lambda i: (0, 0)),        # b2: VMEM-resident
    ]
    out_spec = pl.BlockSpec((eff_tile, N_PAD), lambda i: (i, 0))

    flops = 2 * b_pad * (K_IN * HID + HID * N_PAD)
    bytes_accessed = (b_pad * K_IN * 4                      # x f32 stream (read once)
                      + w1_b.size * 2 + b1_r.size * 4
                      + w2_p.size * 2 + b2_p.size * 4
                      + b_pad * N_PAD * 4)                  # f32 logits writeback

    out_padded = pl.pallas_call(
        mlp_kernel,
        out_shape=jax.ShapeDtypeStruct((b_pad, N_PAD), jnp.float32),
        grid=(num_tiles,),
        in_specs=in_specs,
        out_specs=out_spec,
        compiler_params=pltpu.CompilerParams(
            dimension_semantics=("parallel",)),
        cost_estimate=pl.CostEstimate(
            flops=flops, transcendentals=0, bytes_accessed=bytes_accessed),
    )(x_p, w1_b, b1_r, w2_p, b2_p)

    # Slice off padded batch rows and the padded output columns.
    return out_padded[:B, :N_OUT]


def init_params(key):
    """Deterministic init mimicking PyTorch nn.Linear default (U[-1/sqrt(fan_in), +])."""
    k1, k2, k3, k4 = jax.random.split(key, 4)
    fan1 = K_IN
    fan2 = HID
    bound1 = 1.0 / jnp.sqrt(fan1)
    bound2 = 1.0 / jnp.sqrt(fan2)
    # stored as (in_features, out_features) — transposed vs torch's (out, in)
    w1 = jax.random.uniform(k1, (fan1, HID), jnp.float32, -bound1, bound1)
    b1 = jax.random.uniform(k2, (1, HID), jnp.float32, -bound1, bound1)
    w2 = jax.random.uniform(k3, (fan2, N_OUT), jnp.float32, -bound2, bound2)
    b2 = jax.random.uniform(k4, (1, N_OUT), jnp.float32, -bound2, bound2)
    return w1, b1, w2, b2


if __name__ == "__main__":
    key = jax.random.PRNGKey(0)
    kx, kp = jax.random.split(key)

    B = 2
    x = jax.random.normal(kx, (B, 1, 28, 28), jnp.float32)  # NCHW MNIST-like input
    w1, b1, w2, b2 = init_params(kp)

    out = mlp_forward(x, w1, b1, w2, b2)
    jax.block_until_ready(out)
    assert out.shape == (B, N_OUT)

    x_flat = x.reshape(B, -1)
    hp = jax.lax.Precision.HIGHEST

    # Reference matching the kernel's bf16-input / f32-accumulate numerics.
    xb = x_flat.astype(jnp.bfloat16).astype(jnp.float32)
    w1b = w1.astype(jnp.bfloat16).astype(jnp.float32)
    w2b = w2.astype(jnp.bfloat16).astype(jnp.float32)
    h = jnp.maximum(jnp.dot(xb, w1b, precision=hp) + b1, 0.0)
    ref_bf16 = jnp.dot(h.astype(jnp.bfloat16).astype(jnp.float32), w2b, precision=hp) + b2
    assert jnp.allclose(out, ref_bf16, atol=1e-3, rtol=1e-3)

    # Semantic check against the full-f32 PyTorch-equivalent forward (loose tol for bf16).
    ref_f32 = jnp.dot(jnp.maximum(jnp.dot(x_flat, w1, precision=hp) + b1, 0.0),
                      w2, precision=hp) + b2
    assert jnp.allclose(out, ref_f32, atol=5e-2, rtol=5e-2)

    print("KERNEL_OK")
</pallas_src>

<mosaic_0001>
module attributes {stable_mosaic.version = 11 : i64} {
  func.func @mlp_kernel(%arg0: i32, %arg1: memref<256x784xf32, #tpu.memory_space<vmem>>, %arg2: memref<784x128xbf16, #tpu.memory_space<vmem>>, %arg3: memref<1x128xf32, #tpu.memory_space<vmem>>, %arg4: memref<128x128xbf16, #tpu.memory_space<vmem>>, %arg5: memref<1x128xf32, #tpu.memory_space<vmem>>, %arg6: memref<256x128xf32, #tpu.memory_space<vmem>>) attributes {dimension_semantics = [#tpu.dimension_semantics<parallel>], iteration_bounds = array<i64: 1>, scalar_prefetch = 0 : i64, scratch_operands = 0 : i64, tpu.core_type = #tpu.core_type<tc>, window_params = [{transform_indices = @transform_0, window_bounds = array<i64: 256, 784>}, {pipeline_mode = #tpu.pipeline_mode<synchronous>, transform_indices = @transform_1, window_bounds = array<i64: 784, 128>}, {pipeline_mode = #tpu.pipeline_mode<synchronous>, transform_indices = @transform_2, window_bounds = array<i64: 1, 128>}, {pipeline_mode = #tpu.pipeline_mode<synchronous>, transform_indices = @transform_3, window_bounds = array<i64: 128, 128>}, {pipeline_mode = #tpu.pipeline_mode<synchronous>, transform_indices = @transform_4, window_bounds = array<i64: 1, 128>}, {transform_indices = @transform_5, window_bounds = array<i64: 256, 128>}]} {
    %c0 = arith.constant 0 : index
    %c0_0 = arith.constant 0 : index
    %0 = vector.load %arg1[%c0, %c0_0] : memref<256x784xf32, #tpu.memory_space<vmem>>, vector<256x784xf32>
    %1 = arith.truncf %0 : vector<256x784xf32> to vector<256x784xbf16>
    %c0_1 = arith.constant 0 : index
    %c0_2 = arith.constant 0 : index
    %2 = vector.load %arg2[%c0_1, %c0_2] : memref<784x128xbf16, #tpu.memory_space<vmem>>, vector<784x128xbf16>
    %cst = arith.constant dense<0.000000e+00> : vector<256x128xf32>
    %3 = tpu.matmul %1, %2, %cst {dimension_numbers = #tpu.dot_dimension_numbers<[1], [0], [0], [1], [0, 0, 1, 1], [], []>} : vector<256x784xbf16>, vector<784x128xbf16>, vector<256x128xf32> -> vector<256x128xf32>
    %c0_3 = arith.constant 0 : index
    %c0_4 = arith.constant 0 : index
    %4 = vector.load %arg3[%c0_3, %c0_4] : memref<1x128xf32, #tpu.memory_space<vmem>>, vector<1x128xf32>
    %5 = vector.broadcast %4 : vector<1x128xf32> to vector<256x128xf32>
    %6 = arith.addf %3, %5 : vector<256x128xf32>
    %cst_5 = arith.constant 0.000000e+00 : f32
    %7 = vector.broadcast %cst_5 : f32 to vector<256x128xf32>
    %8 = arith.maximumf %6, %7 : vector<256x128xf32>
    %9 = arith.truncf %8 : vector<256x128xf32> to vector<256x128xbf16>
    %c0_6 = arith.constant 0 : index
    %c0_7 = arith.constant 0 : index
    %10 = vector.load %arg4[%c0_6, %c0_7] : memref<128x128xbf16, #tpu.memory_space<vmem>>, vector<128x128xbf16>
    %cst_8 = arith.constant dense<0.000000e+00> : vector<256x128xf32>
    %11 = tpu.matmul %9, %10, %cst_8 {dimension_numbers = #tpu.dot_dimension_numbers<[1], [0], [0], [1], [0, 0, 1, 1], [], []>} : vector<256x128xbf16>, vector<128x128xbf16>, vector<256x128xf32> -> vector<256x128xf32>
    %c0_9 = arith.constant 0 : index
    %c0_10 = arith.constant 0 : index
    %12 = vector.load %arg5[%c0_9, %c0_10] : memref<1x128xf32, #tpu.memory_space<vmem>>, vector<1x128xf32>
    %13 = vector.broadcast %12 : vector<1x128xf32> to vector<256x128xf32>
    %14 = arith.addf %11, %13 : vector<256x128xf32>
    %c0_11 = arith.constant 0 : index
    %c0_12 = arith.constant 0 : index
    %15 = vector.load %arg6[%c0_11, %c0_12] : memref<256x128xf32, #tpu.memory_space<vmem>>, vector<256x128xf32>
    tpu.vector_store %arg6[%c0_11, %c0_12], %14 {strides = array<i32>} : memref<256x128xf32, #tpu.memory_space<vmem>>, vector<256x128xf32>,
    return
  }
  func.func @transform_0(%arg0: i32) -> (i32, i32) {
    %c0_i32 = arith.constant 0 : i32
    %c0_i32_0 = arith.constant 0 : i32
    return %arg0, %c0_i32 : i32, i32
  }
  func.func @transform_1(%arg0: i32) -> (i32, i32) {
    %c0_i32 = arith.constant 0 : i32
    %c0_i32_0 = arith.constant 0 : i32
    %c0_i32_1 = arith.constant 0 : i32
    return %c0_i32, %c0_i32_0 : i32, i32
  }
  func.func @transform_2(%arg0: i32) -> (i32, i32) {
    %c0_i32 = arith.constant 0 : i32
    %c0_i32_0 = arith.constant 0 : i32
    %c0_i32_1 = arith.constant 0 : i32
    return %c0_i32, %c0_i32_0 : i32, i32
  }
  func.func @transform_3(%arg0: i32) -> (i32, i32) {
    %c0_i32 = arith.constant 0 : i32
    %c0_i32_0 = arith.constant 0 : i32
    %c0_i32_1 = arith.constant 0 : i32
    return %c0_i32, %c0_i32_0 : i32, i32
  }
  func.func @transform_4(%arg0: i32) -> (i32, i32) {
    %c0_i32 = arith.constant 0 : i32
    %c0_i32_0 = arith.constant 0 : i32
    %c0_i32_1 = arith.constant 0 : i32
    return %c0_i32, %c0_i32_0 : i32, i32
  }
  func.func @transform_5(%arg0: i32) -> (i32, i32) {
    %c0_i32 = arith.constant 0 : i32
    %c0_i32_0 = arith.constant 0 : i32
    return %arg0, %c0_i32 : i32, i32
  }
}

</mosaic_0001>

<llo_original>
// kernel: mlp_forward.1
$region0: #{mlp_forward.1}
  #allocation0 [shape = 'u32[]', space=smem, size = 0x4, offset = 0x4, fixed_abs, tag = 'smem constant byte address 0x4 - core index']
  #allocation1 [shape = 'u32[144,128]{1,0:T(1,128)}', space=vmem, size = 0x12000, scoped, tag = 'internal scratch']
  %s0 = inlined_call_operand.vmem [shape: f32[256,784], index: 0, kind: input, shape index: {}]
  %s1 = inlined_call_operand.vmem [shape: bf16[784,128], index: 1, kind: input, shape index: {}]
  %s2 = inlined_call_operand.vmem [shape: f32[1,128], index: 2, kind: input, shape index: {}]
  %s3 = inlined_call_operand.vmem [shape: bf16[128,128], index: 3, kind: input, shape index: {}]
  %s4 = inlined_call_operand.vmem [shape: f32[1,128], index: 4, kind: input, shape index: {}]
  %s5 = inlined_call_operand.vmem [shape: f32[256,128], index: 5, kind: output, shape index: {}]
  %s6 = sld [smem:[#allocation0]]
  $region30: #{mlp_forward.1} parent=0
    _
  %s8 = ssub.s32 1, %s6
  %s9 = scalar_select 0, %s8, %s6
  // Predicated region
  $region2: #{mlp_forward.1} parent=0 // pred_check
    _
  $region3: #{mlp_forward.1} parent=0 // pred_check_branch
    %11 = sbr.rel (0) target = $region5
  $region4: #{mlp_forward.1} parent=0 // pred_region
    _
  $region5: #{mlp_forward.1} parent=0 // pred_fallthru
    _
  // Predicated region
  $region6: #{mlp_forward.1} parent=0 // pred_check
    _
  $region7: #{mlp_forward.1} parent=0 // pred_check_branch
    %13 = sbr.rel (0) target = $region9
  $region8: #{mlp_forward.1} parent=0 // pred_region
    _
  $region9: #{mlp_forward.1} parent=0 // pred_fallthru
    _
  // Predicated region
  $region10: #{mlp_forward.1} parent=0 // pred_check
    _
  $region11: #{mlp_forward.1} parent=0 // pred_check_branch
    %15 = sbr.rel (0) target = $region13
  $region12: #{mlp_forward.1} parent=0 // pred_region
    _
  $region13: #{mlp_forward.1} parent=0 // pred_fallthru
    _
  // Predicated region
  $region14: #{mlp_forward.1} parent=0 // pred_check
    _
  $region15: #{mlp_forward.1} parent=0 // pred_check_branch
    %17 = sbr.rel (0) target = $region17
  $region16: #{mlp_forward.1} parent=0 // pred_region
    _
  $region17: #{mlp_forward.1} parent=0 // pred_fallthru
    _
  // Predicated region
  $region18: #{mlp_forward.1} parent=0 // pred_check
    _
  $region19: #{mlp_forward.1} parent=0 // pred_check_branch
    %19 = sbr.rel (0) target = $region21
  $region20: #{mlp_forward.1} parent=0 // pred_region
    _
  $region21: #{mlp_forward.1} parent=0 // pred_fallthru
    _
  %v21 = vld [vmem:[%s0] sm:$0xff]
  %v22 = vld [vmem:[%s0 + $0x8] sm:$0xff]
  %v23 = vld [vmem:[%s0 + $0x10] sm:$0xff]
  %v24 = vld [vmem:[%s0 + $0x18] sm:$0xff]
  %v25 = vld [vmem:[%s0 + $0x20] sm:$0xff]
  %v26 = vld [vmem:[%s0 + $0x28] sm:$0xff]
  %v27 = vld [vmem:[%s0 + $0x30] sm:$0xff]
  %v28 = vld [vmem:[%s0 + $0x38] sm:$0xff]
  %v29 = vld [vmem:[%s0 + $0x40] sm:$0xff]
  %v30 = vld [vmem:[%s0 + $0x48] sm:$0xff]
  %v31 = vld [vmem:[%s0 + $0x50] sm:$0xff]
  %v32 = vld [vmem:[%s0 + $0x58] sm:$0xff]
  %v33 = vld [vmem:[%s0 + $0x60] sm:$0xff]
  %v34 = vld [vmem:[%s0 + $0x68] sm:$0xff]
  %v35 = vld [vmem:[%s0 + $0x70] sm:$0xff]
  %v36 = vld [vmem:[%s0 + $0x78] sm:$0xff]
  %v37 = vld [vmem:[%s0 + $0x80] sm:$0xff]
  %v38 = vld [vmem:[%s0 + $0x88] sm:$0xff]
  %v39 = vld [vmem:[%s0 + $0x90] sm:$0xff]
  %v40 = vld [vmem:[%s0 + $0x98] sm:$0xff]
  %v41 = vld [vmem:[%s0 + $0xa0] sm:$0xff]
  %v42 = vld [vmem:[%s0 + $0xa8] sm:$0xff]
  %v43 = vld [vmem:[%s0 + $0xb0] sm:$0xff]
  %v44 = vld [vmem:[%s0 + $0xb8] sm:$0xff]
  %v45 = vld [vmem:[%s0 + $0xc0] sm:$0xff]
  %v46 = vld [vmem:[%s0 + $0xc8] sm:$0xff]
  %v47 = vld [vmem:[%s0 + $0xd0] sm:$0xff]
  %v48 = vld [vmem:[%s0 + $0xd8] sm:$0xff]
  %v49 = vld [vmem:[%s0 + $0xe0] sm:$0xff]
  %v50 = vld [vmem:[%s0 + $0xe8] sm:$0xff]
  %v51 = vld [vmem:[%s0 + $0xf0] sm:$0xff]
  %v52 = vld [vmem:[%s0 + $0xf8] sm:$0xff]
  %v53 = vld [vmem:[%s0 + $0x100] sm:$0xff]
  %v54 = vld [vmem:[%s0 + $0x108] sm:$0xff]
  %v55 = vld [vmem:[%s0 + $0x110] sm:$0xff]
  %v56 = vld [vmem:[%s0 + $0x118] sm:$0xff]
  %v57 = vld [vmem:[%s0 + $0x120] sm:$0xff]
  %v58 = vld [vmem:[%s0 + $0x128] sm:$0xff]
  %v59 = vld [vmem:[%s0 + $0x130] sm:$0xff]
  %v60 = vld [vmem:[%s0 + $0x138] sm:$0xff]
  %v61 = vld [vmem:[%s0 + $0x140] sm:$0xff]
  %v62 = vld [vmem:[%s0 + $0x148] sm:$0xff]
  %v63 = vld [vmem:[%s0 + $0x150] sm:$0xff]
  %v64 = vld [vmem:[%s0 + $0x158] sm:$0xff]
  %v65 = vld [vmem:[%s0 + $0x160] sm:$0xff]
  %v66 = vld [vmem:[%s0 + $0x168] sm:$0xff]
  %v67 = vld [vmem:[%s0 + $0x170] sm:$0xff]
  %v68 = vld [vmem:[%s0 + $0x178] sm:$0xff]
  %v69 = vld [vmem:[%s0 + $0x180] sm:$0xff]
  %v70 = vld [vmem:[%s0 + $0x188] sm:$0xff]
  %v71 = vld [vmem:[%s0 + $0x190] sm:$0xff]
  %v72 = vld [vmem:[%s0 + $0x198] sm:$0xff]
  %v73 = vld [vmem:[%s0 + $0x1a0] sm:$0xff]
  %v74 = vld [vmem:[%s0 + $0x1a8] sm:$0xff]
  %v75 = vld [vmem:[%s0 + $0x1b0] sm:$0xff]
  %v76 = vld [vmem:[%s0 + $0x1b8] sm:$0xff]
  %v77 = vld [vmem:[%s0 + $0x1c0] sm:$0xff]
  %v78 = vld [vmem:[%s0 + $0x1c8] sm:$0xff]
  %v79 = vld [vmem:[%s0 + $0x1d0] sm:$0xff]
  %v80 = vld [vmem:[%s0 + $0x1d8] sm:$0xff]
  %v81 = vld [vmem:[%s0 + $0x1e0] sm:$0xff]
  %v82 = vld [vmem:[%s0 + $0x1e8] sm:$0xff]
  %v83 = vld [vmem:[%s0 + $0x1f0] sm:$0xff]
  %v84 = vld [vmem:[%s0 + $0x1f8] sm:$0xff]
  %v85 = vld [vmem:[%s0 + $0x200] sm:$0xff]
  %v86 = vld [vmem:[%s0 + $0x208] sm:$0xff]
  %v87 = vld [vmem:[%s0 + $0x210] sm:$0xff]
  %v88 = vld [vmem:[%s0 + $0x218] sm:$0xff]
  %v89 = vld [vmem:[%s0 + $0x220] sm:$0xff]
  %v90 = vld [vmem:[%s0 + $0x228] sm:$0xff]
  %v91 = vld [vmem:[%s0 + $0x230] sm:$0xff]
  %v92 = vld [vmem:[%s0 + $0x238] sm:$0xff]
  %v93 = vld [vmem:[%s0 + $0x240] sm:$0xff]
  %v94 = vld [vmem:[%s0 + $0x248] sm:$0xff]
  %v95 = vld [vmem:[%s0 + $0x250] sm:$0xff]
  %v96 = vld [vmem:[%s0 + $0x258] sm:$0xff]
  %v97 = vld [vmem:[%s0 + $0x260] sm:$0xff]
  %v98 = vld [vmem:[%s0 + $0x268] sm:$0xff]
  %v99 = vld [vmem:[%s0 + $0x270] sm:$0xff]
  %v100 = vld [vmem:[%s0 + $0x278] sm:$0xff]
  %v101 = vld [vmem:[%s0 + $0x280] sm:$0xff]
  %v102 = vld [vmem:[%s0 + $0x288] sm:$0xff]
  %v103 = vld [vmem:[%s0 + $0x290] sm:$0xff]
  %v104 = vld [vmem:[%s0 + $0x298] sm:$0xff]
  %v105 = vld [vmem:[%s0 + $0x2a0] sm:$0xff]
  %v106 = vld [vmem:[%s0 + $0x2a8] sm:$0xff]
  %v107 = vld [vmem:[%s0 + $0x2b0] sm:$0xff]
  %v108 = vld [vmem:[%s0 + $0x2b8] sm:$0xff]
  %v109 = vld [vmem:[%s0 + $0x2c0] sm:$0xff]
  %v110 = vld [vmem:[%s0 + $0x2c8] sm:$0xff]
  %v111 = vld [vmem:[%s0 + $0x2d0] sm:$0xff]
  %v112 = vld [vmem:[%s0 + $0x2d8] sm:$0xff]
  %v113 = vld [vmem:[%s0 + $0x2e0] sm:$0xff]
  %v114 = vld [vmem:[%s0 + $0x2e8] sm:$0xff]
  %v115 = vld [vmem:[%s0 + $0x2f0] sm:$0xff]
  %v116 = vld [vmem:[%s0 + $0x2f8] sm:$0xff]
  %v117 = vld [vmem:[%s0 + $0x300] sm:$0xff]
  %v118 = vld [vmem:[%s0 + $0x308] sm:$0xff]
  %v119 = vld [vmem:[%s0 + $0x310] sm:$0xff]
  %v120 = vld [vmem:[%s0 + $0x318] sm:$0xff]
  %v121 = vld [vmem:[%s0 + $0x320] sm:$0xff]
  %v122 = vld [vmem:[%s0 + $0x328] sm:$0xff]
  %v123 = vld [vmem:[%s0 + $0x330] sm:$0xff]
  %v124 = vld [vmem:[%s0 + $0x338] sm:$0xff]
  %v125 = vld [vmem:[%s0 + $0x340] sm:$0xff]
  %v126 = vld [vmem:[%s0 + $0x348] sm:$0xff]
  %v127 = vld [vmem:[%s0 + $0x350] sm:$0xff]
  %v128 = vld [vmem:[%s0 + $0x358] sm:$0xff]
  %v129 = vld [vmem:[%s0 + $0x360] sm:$0xff]
  %v130 = vld [vmem:[%s0 + $0x368] sm:$0xff]
  %v131 = vld [vmem:[%s0 + $0x370] sm:$0xff]
  %v132 = vld [vmem:[%s0 + $0x378] sm:$0xff]
  %v133 = vld [vmem:[%s0 + $0x380] sm:$0xff]
  %v134 = vld [vmem:[%s0 + $0x388] sm:$0xff]
  %v135 = vld [vmem:[%s0 + $0x390] sm:$0xff]
  %v136 = vld [vmem:[%s0 + $0x398] sm:$0xff]
  %v137 = vld [vmem:[%s0 + $0x3a0] sm:$0xff]
  %v138 = vld [vmem:[%s0 + $0x3a8] sm:$0xff]
  %v139 = vld [vmem:[%s0 + $0x3b0] sm:$0xff]
  %v140 = vld [vmem:[%s0 + $0x3b8] sm:$0xff]
  %v141 = vld [vmem:[%s0 + $0x3c0] sm:$0xff]
  %v142 = vld [vmem:[%s0 + $0x3c8] sm:$0xff]
  %v143 = vld [vmem:[%s0 + $0x3d0] sm:$0xff]
  %v144 = vld [vmem:[%s0 + $0x3d8] sm:$0xff]
  %v145 = vld [vmem:[%s0 + $0x3e0] sm:$0xff]
  %v146 = vld [vmem:[%s0 + $0x3e8] sm:$0xff]
  %v147 = vld [vmem:[%s0 + $0x3f0] sm:$0xff]
  %v148 = vld [vmem:[%s0 + $0x3f8] sm:$0xff]
  %v149 = vld [vmem:[%s0 + $0x400] sm:$0xff]
  %v150 = vld [vmem:[%s0 + $0x408] sm:$0xff]
  %v151 = vld [vmem:[%s0 + $0x410] sm:$0xff]
  %v152 = vld [vmem:[%s0 + $0x418] sm:$0xff]
  %v153 = vld [vmem:[%s0 + $0x420] sm:$0xff]
  %v154 = vld [vmem:[%s0 + $0x428] sm:$0xff]
  %v155 = vld [vmem:[%s0 + $0x430] sm:$0xff]
  %v156 = vld [vmem:[%s0 + $0x438] sm:$0xff]
  %v157 = vld [vmem:[%s0 + $0x440] sm:$0xff]
  %v158 = vld [vmem:[%s0 + $0x448] sm:$0xff]
  %v159 = vld [vmem:[%s0 + $0x450] sm:$0xff]
  %v160 = vld [vmem:[%s0 + $0x458] sm:$0xff]
  %v161 = vld [vmem:[%s0 + $0x460] sm:$0xff]
  %v162 = vld [vmem:[%s0 + $0x468] sm:$0xff]
  %v163 = vld [vmem:[%s0 + $0x470] sm:$0xff]
  %v164 = vld [vmem:[%s0 + $0x478] sm:$0xff]
  %v165 = vld [vmem:[%s0 + $0x480] sm:$0xff]
  %v166 = vld [vmem:[%s0 + $0x488] sm:$0xff]
  %v167 = vld [vmem:[%s0 + $0x490] sm:$0xff]
  %v168 = vld [vmem:[%s0 + $0x498] sm:$0xff]
  %v169 = vld [vmem:[%s0 + $0x4a0] sm:$0xff]
  %v170 = vld [vmem:[%s0 + $0x4a8] sm:$0xff]
  %v171 = vld [vmem:[%s0 + $0x4b0] sm:$0xff]
  %v172 = vld [vmem:[%s0 + $0x4b8] sm:$0xff]
  %v173 = vld [vmem:[%s0 + $0x4c0] sm:$0xff]
  %v174 = vld [vmem:[%s0 + $0x4c8] sm:$0xff]
  %v175 = vld [vmem:[%s0 + $0x4d0] sm:$0xff]
  %v176 = vld [vmem:[%s0 + $0x4d8] sm:$0xff]
  %v177 = vld [vmem:[%s0 + $0x4e0] sm:$0xff]
  %v178 = vld [vmem:[%s0 + $0x4e8] sm:$0xff]
  %v179 = vld [vmem:[%s0 + $0x4f0] sm:$0xff]
  %v180 = vld [vmem:[%s0 + $0x4f8] sm:$0xff]
  %v181 = vld [vmem:[%s0 + $0x500] sm:$0xff]
  %v182 = vld [vmem:[%s0 + $0x508] sm:$0xff]
  %v183 = vld [vmem:[%s0 + $0x510] sm:$0xff]
  %v184 = vld [vmem:[%s0 + $0x518] sm:$0xff]
  %v185 = vld [vmem:[%s0 + $0x520] sm:$0xff]
  %v186 = vld [vmem:[%s0 + $0x528] sm:$0xff]
  %v187 = vld [vmem:[%s0 + $0x530] sm:$0xff]
  %v188 = vld [vmem:[%s0 + $0x538] sm:$0xff]
  %v189 = vld [vmem:[%s0 + $0x540] sm:$0xff]
  %v190 = vld [vmem:[%s0 + $0x548] sm:$0xff]
  %v191 = vld [vmem:[%s0 + $0x550] sm:$0xff]
  %v192 = vld [vmem:[%s0 + $0x558] sm:$0xff]
  %v193 = vld [vmem:[%s0 + $0x560] sm:$0xff]
  %v194 = vld [vmem:[%s0 + $0x568] sm:$0xff]
  %v195 = vld [vmem:[%s0 + $0x570] sm:$0xff]
  %v196 = vld [vmem:[%s0 + $0x578] sm:$0xff]
  %v197 = vld [vmem:[%s0 + $0x580] sm:$0xff]
  %v198 = vld [vmem:[%s0 + $0x588] sm:$0xff]
  %v199 = vld [vmem:[%s0 + $0x590] sm:$0xff]
  %v200 = vld [vmem:[%s0 + $0x598] sm:$0xff]
  %v201 = vld [vmem:[%s0 + $0x5a0] sm:$0xff]
  %v202 = vld [vmem:[%s0 + $0x5a8] sm:$0xff]
  %v203 = vld [vmem:[%s0 + $0x5b0] sm:$0xff]
  %v204 = vld [vmem:[%s0 + $0x5b8] sm:$0xff]
  %v205 = vld [vmem:[%s0 + $0x5c0] sm:$0xff]
  %v206 = vld [vmem:[%s0 + $0x5c8] sm:$0xff]
  %v207 = vld [vmem:[%s0 + $0x5d0] sm:$0xff]
  %v208 = vld [vmem:[%s0 + $0x5d8] sm:$0xff]
  %v209 = vld [vmem:[%s0 + $0x5e0] sm:$0xff]
  %v210 = vld [vmem:[%s0 + $0x5e8] sm:$0xff]
  %v211 = vld [vmem:[%s0 + $0x5f0] sm:$0xff]
  %v212 = vld [vmem:[%s0 + $0x5f8] sm:$0xff]
  %v213 = vld [vmem:[%s0 + $0x600] sm:$0xff]
  %v214 = vld [vmem:[%s0 + $0x608] sm:$0xff]
  %v215 = vld [vmem:[%s0 + $0x610] sm:$0xff]
  %v216 = vld [vmem:[%s0 + $0x618] sm:$0xff]
  %v217 = vld [vmem:[%s0 + $0x620] sm:$0xff]
  %v218 = vld [vmem:[%s0 + $0x628] sm:$0xff]
  %v219 = vld [vmem:[%s0 + $0x630] sm:$0xff]
  %v220 = vld [vmem:[%s0 + $0x638] sm:$0xff]
  %v221 = vld [vmem:[%s0 + $0x640] sm:$0xff]
  %v222 = vld [vmem:[%s0 + $0x648] sm:$0xff]
  %v223 = vld [vmem:[%s0 + $0x650] sm:$0xff]
  %v224 = vld [vmem:[%s0 + $0x658] sm:$0xff]
  %v225 = vld [vmem:[%s0 + $0x660] sm:$0xff]
  %v226 = vld [vmem:[%s0 + $0x668] sm:$0xff]
  %v227 = vld [vmem:[%s0 + $0x670] sm:$0xff]
  %v228 = vld [vmem:[%s0 + $0x678] sm:$0xff]
  %v229 = vld [vmem:[%s0 + $0x680] sm:$0xff]
  %v230 = vld [vmem:[%s0 + $0x688] sm:$0xff]
  %v231 = vld [vmem:[%s0 + $0x690] sm:$0xff]
  %v232 = vld [vmem:[%s0 + $0x698] sm:$0xff]
  %v233 = vld [vmem:[%s0 + $0x6a0] sm:$0xff]
  %v234 = vld [vmem:[%s0 + $0x6a8] sm:$0xff]
  %v235 = vld [vmem:[%s0 + $0x6b0] sm:$0xff]
  %v236 = vld [vmem:[%s0 + $0x6b8] sm:$0xff]
  %v237 = vld [vmem:[%s0 + $0x6c0] sm:$0xff]
  %v238 = vld [vmem:[%s0 + $0x6c8] sm:$0xff]
  %v239 = vld [vmem:[%s0 + $0x6d0] sm:$0xff]
  %v240 = vld [vmem:[%s0 + $0x6d8] sm:$0xff]
  %v241 = vld [vmem:[%s0 + $0x6e0] sm:$0xff]
  %v242 = vld [vmem:[%s0 + $0x6e8] sm:$0xff]
  %v243 = vld [vmem:[%s0 + $0x6f0] sm:$0xff]
  %v244 = vld [vmem:[%s0 + $0x6f8] sm:$0xff]
  %v245 = vpack.c.bf16 %v28, %v21
  %v246 = vpack.c.bf16 %v29, %v22
  %v247 = vpack.c.bf16 %v30, %v23
  %v248 = vpack.c.bf16 %v31, %v24
  %v249 = vpack.c.bf16 %v32, %v25
  %v250 = vpack.c.bf16 %v33, %v26
  %v251 = vpack.c.bf16 %v34, %v27
  %v252 = vpack.c.bf16 %v42, %v35
  %v253 = vpack.c.bf16 %v43, %v36
  %v254 = vpack.c.bf16 %v44, %v37
  %v255 = vpack.c.bf16 %v45, %v38
  %v256 = vpack.c.bf16 %v46, %v39
  %v257 = vpack.c.bf16 %v47, %v40
  %v258 = vpack.c.bf16 %v48, %v41
  %v259 = vpack.c.bf16 %v56, %v49
  %v260 = vpack.c.bf16 %v57, %v50
  %v261 = vpack.c.bf16 %v58, %v51
  %v262 = vpack.c.bf16 %v59, %v52
  %v263 = vpack.c.bf16 %v60, %v53
  %v264 = vpack.c.bf16 %v61, %v54
  %v265 = vpack.c.bf16 %v62, %v55
  %v266 = vpack.c.bf16 %v70, %v63
  %v267 = vpack.c.bf16 %v71, %v64
  %v268 = vpack.c.bf16 %v72, %v65
  %v269 = vpack.c.bf16 %v73, %v66
  %v270 = vpack.c.bf16 %v74, %v67
  %v271 = vpack.c.bf16 %v75, %v68
  %v272 = vpack.c.bf16 %v76, %v69
  %v273 = vpack.c.bf16 %v84, %v77
  %v274 = vpack.c.bf16 %v85, %v78
  %v275 = vpack.c.bf16 %v86, %v79
  %v276 = vpack.c.bf16 %v87, %v80
  %v277 = vpack.c.bf16 %v88, %v81
  %v278 = vpack.c.bf16 %v89, %v82
  %v279 = vpack.c.bf16 %v90, %v83
  %v280 = vpack.c.bf16 %v98, %v91
  %v281 = vpack.c.bf16 %v99, %v92
  %v282 = vpack.c.bf16 %v100, %v93
  %v283 = vpack.c.bf16 %v101, %v94
  %v284 = vpack.c.bf16 %v102, %v95
  %v285 = vpack.c.bf16 %v103, %v96
  %v286 = vpack.c.bf16 %v104, %v97
  %v287 = vpack.c.bf16 %v112, %v105
  %v288 = vpack.c.bf16 %v113, %v106
  %v289 = vpack.c.bf16 %v114, %v107
  %v290 = vpack.c.bf16 %v115, %v108
  %v291 = vpack.c.bf16 %v116, %v109
  %v292 = vpack.c.bf16 %v117, %v110
  %v293 = vpack.c.bf16 %v118, %v111
  %v294 = vpack.c.bf16 %v126, %v119
  %v295 = vpack.c.bf16 %v127, %v120
  %v296 = vpack.c.bf16 %v128, %v121
  %v297 = vpack.c.bf16 %v129, %v122
  %v298 = vpack.c.bf16 %v130, %v123
  %v299 = vpack.c.bf16 %v131, %v124
  %v300 = vpack.c.bf16 %v132, %v125
  %v301 = vpack.c.bf16 %v140, %v133
  %v302 = vpack.c.bf16 %v141, %v134
  %v303 = vpack.c.bf16 %v142, %v135
  %v304 = vpack.c.bf16 %v143, %v136
  %v305 = vpack.c.bf16 %v144, %v137
  %v306 = vpack.c.bf16 %v145, %v138
  %v307 = vpack.c.bf16 %v146, %v139
  %v308 = vpack.c.bf16 %v154, %v147
  %v309 = vpack.c.bf16 %v155, %v148
  %v310 = vpack.c.bf16 %v156, %v149
  %v311 = vpack.c.bf16 %v157, %v150
  %v312 = vpack.c.bf16 %v158, %v151
  %v313 = vpack.c.bf16 %v159, %v152
  %v314 = vpack.c.bf16 %v160, %v153
  %v315 = vpack.c.bf16 %v168, %v161
  %v316 = vpack.c.bf16 %v169, %v162
  %v317 = vpack.c.bf16 %v170, %v163
  %v318 = vpack.c.bf16 %v171, %v164
  %v319 = vpack.c.bf16 %v172, %v165
  %v320 = vpack.c.bf16 %v173, %v166
  %v321 = vpack.c.bf16 %v174, %v167
  %v322 = vpack.c.bf16 %v182, %v175
  %v323 = vpack.c.bf16 %v183, %v176
  %v324 = vpack.c.bf16 %v184, %v177
  %v325 = vpack.c.bf16 %v185, %v178
  %v326 = vpack.c.bf16 %v186, %v179
  %v327 = vpack.c.bf16 %v187, %v180
  %v328 = vpack.c.bf16 %v188, %v181
  %v329 = vpack.c.bf16 %v196, %v189
  %v330 = vpack.c.bf16 %v197, %v190
  %v331 = vpack.c.bf16 %v198, %v191
  %v332 = vpack.c.bf16 %v199, %v192
  %v333 = vpack.c.bf16 %v200, %v193
  %v334 = vpack.c.bf16 %v201, %v194
  %v335 = vpack.c.bf16 %v202, %v195
  %v336 = vpack.c.bf16 %v210, %v203
  %v337 = vpack.c.bf16 %v211, %v204
  %v338 = vpack.c.bf16 %v212, %v205
  %v339 = vpack.c.bf16 %v213, %v206
  %v340 = vpack.c.bf16 %v214, %v207
  %v341 = vpack.c.bf16 %v215, %v208
  %v342 = vpack.c.bf16 %v216, %v209
  %v343 = vpack.c.bf16 %v224, %v217
  %v344 = vpack.c.bf16 %v225, %v218
  %v345 = vpack.c.bf16 %v226, %v219
  %v346 = vpack.c.bf16 %v227, %v220
  %v347 = vpack.c.bf16 %v228, %v221
  %v348 = vpack.c.bf16 %v229, %v222
  %v349 = vpack.c.bf16 %v230, %v223
  %v350 = vpack.c.bf16 %v238, %v231
  %v351 = vpack.c.bf16 %v239, %v232
  %v352 = vpack.c.bf16 %v240, %v233
  %v353 = vpack.c.bf16 %v241, %v234
  %v354 = vpack.c.bf16 %v242, %v235
  %v355 = vpack.c.bf16 %v243, %v236
  %v356 = vpack.c.bf16 %v244, %v237
  %v357 = vld [vmem:[%s1] sm:$0xf]
  %v358 = vld [vmem:[%s1 + $0x4] sm:$0xf]
  %v359 = vld [vmem:[%s1 + $0x8] sm:$0xf]
  %v360 = vld [vmem:[%s1 + $0xc] sm:$0xf]
  %v361 = vld [vmem:[%s1 + $0x10] sm:$0xf]
  %v362 = vld [vmem:[%s1 + $0x14] sm:$0xf]
  %v363 = vld [vmem:[%s1 + $0x18] sm:$0xf]
  %v364 = vld [vmem:[%s1 + $0x1c] sm:$0xf]
  %v365 = vld [vmem:[%s1 + $0x20] sm:$0xf]
  %v366 = vld [vmem:[%s1 + $0x24] sm:$0xf]
  %v367 = vld [vmem:[%s1 + $0x28] sm:$0xf]
  %v368 = vld [vmem:[%s1 + $0x2c] sm:$0xf]
  %v369 = vld [vmem:[%s1 + $0x30] sm:$0xf]
  %v370 = vld [vmem:[%s1 + $0x34] sm:$0xf]
  %v371 = vld [vmem:[%s1 + $0x38] sm:$0xf]
  %v372 = vld [vmem:[%s1 + $0x3c] sm:$0xf]
  %v373 = vld [vmem:[%s1 + $0x40] sm:$0xf]
  %v374 = vld [vmem:[%s1 + $0x44] sm:$0xf]
  %v375 = vld [vmem:[%s1 + $0x48] sm:$0xf]
  %v376 = vld [vmem:[%s1 + $0x4c] sm:$0xf]
  %v377 = vld [vmem:[%s1 + $0x50] sm:$0xf]
  %v378 = vld [vmem:[%s1 + $0x54] sm:$0xf]
  %v379 = vld [vmem:[%s1 + $0x58] sm:$0xf]
  %v380 = vld [vmem:[%s1 + $0x5c] sm:$0xf]
  %v381 = vld [vmem:[%s1 + $0x60] sm:$0xf]
  %v382 = vld [vmem:[%s1 + $0x64] sm:$0xf]
  %v383 = vld [vmem:[%s1 + $0x68] sm:$0xf]
  %v384 = vld [vmem:[%s1 + $0x6c] sm:$0xf]
  %v385 = vld [vmem:[%s1 + $0x70] sm:$0xf]
  %v386 = vld [vmem:[%s1 + $0x74] sm:$0xf]
  %v387 = vld [vmem:[%s1 + $0x78] sm:$0xf]
  %v388 = vld [vmem:[%s1 + $0x7c] sm:$0xf]
  %v389 = vld [vmem:[%s1 + $0x80] sm:$0xf]
  %v390 = vld [vmem:[%s1 + $0x84] sm:$0xf]
  %v391 = vld [vmem:[%s1 + $0x88] sm:$0xf]
  %v392 = vld [vmem:[%s1 + $0x8c] sm:$0xf]
  %v393 = vld [vmem:[%s1 + $0x90] sm:$0xf]
  %v394 = vld [vmem:[%s1 + $0x94] sm:$0xf]
  %v395 = vld [vmem:[%s1 + $0x98] sm:$0xf]
  %v396 = vld [vmem:[%s1 + $0x9c] sm:$0xf]
  %v397 = vld [vmem:[%s1 + $0xa0] sm:$0xf]
  %v398 = vld [vmem:[%s1 + $0xa4] sm:$0xf]
  %v399 = vld [vmem:[%s1 + $0xa8] sm:$0xf]
  %v400 = vld [vmem:[%s1 + $0xac] sm:$0xf]
  %v401 = vld [vmem:[%s1 + $0xb0] sm:$0xf]
  %v402 = vld [vmem:[%s1 + $0xb4] sm:$0xf]
  %v403 = vld [vmem:[%s1 + $0xb8] sm:$0xf]
  %v404 = vld [vmem:[%s1 + $0xbc] sm:$0xf]
  %v405 = vld [vmem:[%s1 + $0xc0] sm:$0xf]
  %v406 = vld [vmem:[%s1 + $0xc4] sm:$0xf]
  %v407 = vld [vmem:[%s1 + $0xc8] sm:$0xf]
  %v408 = vld [vmem:[%s1 + $0xcc] sm:$0xf]
  %v409 = vld [vmem:[%s1 + $0xd0] sm:$0xf]
  %v410 = vld [vmem:[%s1 + $0xd4] sm:$0xf]
  %v411 = vld [vmem:[%s1 + $0xd8] sm:$0xf]
  %v412 = vld [vmem:[%s1 + $0xdc] sm:$0xf]
  %v413 = vld [vmem:[%s1 + $0xe0] sm:$0xf]
  %v414 = vld [vmem:[%s1 + $0xe4] sm:$0xf]
  %v415 = vld [vmem:[%s1 + $0xe8] sm:$0xf]
  %v416 = vld [vmem:[%s1 + $0xec] sm:$0xf]
  %v417 = vld [vmem:[%s1 + $0xf0] sm:$0xf]
  %v418 = vld [vmem:[%s1 + $0xf4] sm:$0xf]
  %v419 = vld [vmem:[%s1 + $0xf8] sm:$0xf]
  %v420 = vld [vmem:[%s1 + $0xfc] sm:$0xf]
  %v421 = vld [vmem:[%s1 + $0x100] sm:$0xf]
  %v422 = vld [vmem:[%s1 + $0x104] sm:$0xf]
  %v423 = vld [vmem:[%s1 + $0x108] sm:$0xf]
  %v424 = vld [vmem:[%s1 + $0x10c] sm:$0xf]
  %v425 = vld [vmem:[%s1 + $0x110] sm:$0xf]
  %v426 = vld [vmem:[%s1 + $0x114] sm:$0xf]
  %v427 = vld [vmem:[%s1 + $0x118] sm:$0xf]
  %v428 = vld [vmem:[%s1 + $0x11c] sm:$0xf]
  %v429 = vld [vmem:[%s1 + $0x120] sm:$0xf]
  %v430 = vld [vmem:[%s1 + $0x124] sm:$0xf]
  %v431 = vld [vmem:[%s1 + $0x128] sm:$0xf]
  %v432 = vld [vmem:[%s1 + $0x12c] sm:$0xf]
  %v433 = vld [vmem:[%s1 + $0x130] sm:$0xf]
  %v434 = vld [vmem:[%s1 + $0x134] sm:$0xf]
  %v435 = vld [vmem:[%s1 + $0x138] sm:$0xf]
  %v436 = vld [vmem:[%s1 + $0x13c] sm:$0xf]
  %v437 = vld [vmem:[%s1 + $0x140] sm:$0xf]
  %v438 = vld [vmem:[%s1 + $0x144] sm:$0xf]
  %v439 = vld [vmem:[%s1 + $0x148] sm:$0xf]
  %v440 = vld [vmem:[%s1 + $0x14c] sm:$0xf]
  %v441 = vld [vmem:[%s1 + $0x150] sm:$0xf]
  %v442 = vld [vmem:[%s1 + $0x154] sm:$0xf]
  %v443 = vld [vmem:[%s1 + $0x158] sm:$0xf]
  %v444 = vld [vmem:[%s1 + $0x15c] sm:$0xf]
  %v445 = vld [vmem:[%s1 + $0x160] sm:$0xf]
  %v446 = vld [vmem:[%s1 + $0x164] sm:$0xf]
  %v447 = vld [vmem:[%s1 + $0x168] sm:$0xf]
  %v448 = vld [vmem:[%s1 + $0x16c] sm:$0xf]
  %v449 = vld [vmem:[%s1 + $0x170] sm:$0xf]
  %v450 = vld [vmem:[%s1 + $0x174] sm:$0xf]
  %v451 = vld [vmem:[%s1 + $0x178] sm:$0xf]
  %v452 = vld [vmem:[%s1 + $0x17c] sm:$0xf]
  %v453 = vld [vmem:[%s1 + $0x180] sm:$0xf]
  %v454 = vld [vmem:[%s1 + $0x184] sm:$0xf]
  %v455 = vld [vmem:[%s2] sm:$0x1]
  %v457 = vlaneseq
  %v458 = vshrl.u32 %v457, 7
  %v459 = vsub.s32 0, %v458
  %v460 = vrot.slane %v455, %v459
  %v560 = vunpack.c.l.b16 %v357
  %v561 = vunpack.c.l.b16 %v358
  %v562 = vunpack.c.l.b16 %v359
  %v563 = vunpack.c.l.b16 %v360
  %v564 = vunpack.c.l.b16 %v361
  %v565 = vunpack.c.l.b16 %v362
  %v566 = vunpack.c.l.b16 %v363
  %v567 = vunpack.c.l.b16 %v364
  %v568 = vunpack.c.l.b16 %v365
  %v569 = vunpack.c.l.b16 %v366
  %v570 = vunpack.c.l.b16 %v367
  %v571 = vunpack.c.l.b16 %v368
  %v572 = vunpack.c.l.b16 %v369
  %v573 = vunpack.c.l.b16 %v370
  %v574 = vunpack.c.l.b16 %v371
  %v575 = vunpack.c.l.b16 %v372
  %v576 = vunpack.c.l.b16 %v373
  %v577 = vunpack.c.l.b16 %v374
  %v578 = vunpack.c.l.b16 %v375
  %v579 = vunpack.c.l.b16 %v376
  %v580 = vunpack.c.l.b16 %v377
  %v581 = vunpack.c.l.b16 %v378
  %v582 = vunpack.c.l.b16 %v379
  %v583 = vunpack.c.l.b16 %v380
  %v584 = vunpack.c.l.b16 %v381
  %v585 = vunpack.c.l.b16 %v382
  %v586 = vunpack.c.l.b16 %v383
  %v587 = vunpack.c.l.b16 %v384
  %v588 = vunpack.c.l.b16 %v385
  %v589 = vunpack.c.l.b16 %v386
  %v590 = vunpack.c.l.b16 %v387
  %v591 = vunpack.c.l.b16 %v388
  %v592 = vunpack.c.l.b16 %v389
  %v593 = vunpack.c.l.b16 %v390
  %v594 = vunpack.c.l.b16 %v391
  %v595 = vunpack.c.l.b16 %v392
  %v596 = vunpack.c.l.b16 %v393
  %v597 = vunpack.c.l.b16 %v394
  %v598 = vunpack.c.l.b16 %v395
  %v599 = vunpack.c.l.b16 %v396
  %v600 = vunpack.c.l.b16 %v397
  %v601 = vunpack.c.l.b16 %v398
  %v602 = vunpack.c.l.b16 %v399
  %v603 = vunpack.c.l.b16 %v400
  %v604 = vunpack.c.l.b16 %v401
  %v605 = vunpack.c.l.b16 %v402
  %v606 = vunpack.c.l.b16 %v403
  %v607 = vunpack.c.l.b16 %v404
  %v608 = vunpack.c.l.b16 %v405
  %v609 = vunpack.c.l.b16 %v406
  %v610 = vunpack.c.l.b16 %v407
  %v611 = vunpack.c.l.b16 %v408
  %v612 = vunpack.c.l.b16 %v409
  %v613 = vunpack.c.l.b16 %v410
  %v614 = vunpack.c.l.b16 %v411
  %v615 = vunpack.c.l.b16 %v412
  %v616 = vunpack.c.l.b16 %v413
  %v617 = vunpack.c.l.b16 %v414
  %v618 = vunpack.c.l.b16 %v415
  %v619 = vunpack.c.l.b16 %v416
  %v620 = vunpack.c.l.b16 %v417
  %v621 = vunpack.c.l.b16 %v418
  %v622 = vunpack.c.l.b16 %v419
  %v623 = vunpack.c.l.b16 %v420
  %v624 = vunpack.c.l.b16 %v421
  %v625 = vunpack.c.l.b16 %v422
  %v626 = vunpack.c.l.b16 %v423
  %v627 = vunpack.c.l.b16 %v424
  %v628 = vunpack.c.l.b16 %v425
  %v629 = vunpack.c.l.b16 %v426
  %v630 = vunpack.c.l.b16 %v427
  %v631 = vunpack.c.l.b16 %v428
  %v632 = vunpack.c.l.b16 %v429
  %v633 = vunpack.c.l.b16 %v430
  %v634 = vunpack.c.l.b16 %v431
  %v635 = vunpack.c.l.b16 %v432
  %v636 = vunpack.c.l.b16 %v433
  %v637 = vunpack.c.l.b16 %v434
  %v638 = vunpack.c.l.b16 %v435
  %v639 = vunpack.c.l.b16 %v436
  %v640 = vunpack.c.l.b16 %v437
  %v641 = vunpack.c.l.b16 %v438
  %v642 = vunpack.c.l.b16 %v439
  %v643 = vunpack.c.l.b16 %v440
  %v644 = vunpack.c.l.b16 %v441
  %v645 = vunpack.c.l.b16 %v442
  %v646 = vunpack.c.l.b16 %v443
  %v647 = vunpack.c.l.b16 %v444
  %v648 = vunpack.c.l.b16 %v445
  %v649 = vunpack.c.l.b16 %v446
  %v650 = vunpack.c.l.b16 %v447
  %v651 = vunpack.c.l.b16 %v448
  %v652 = vunpack.c.l.b16 %v449
  %v653 = vunpack.c.l.b16 %v450
  %v654 = vunpack.c.l.b16 %v451
  %v655 = vunpack.c.l.b16 %v452
  %v656 = vunpack.c.l.b16 %v453
  %v657 = vunpack.c.l.b16 %v454
  %v658 = vpack.c.b16 %v561, %v560
  %v659 = vpack.c.b16 %v563, %v562
  %v660 = vpack.c.b16 %v565, %v564
  %v661 = vpack.c.b16 %v567, %v566
  %v662 = vpack.c.b16 %v569, %v568
  %v663 = vpack.c.b16 %v571, %v570
  %v664 = vpack.c.b16 %v573, %v572
  %v665 = vpack.c.b16 %v575, %v574
  %v666 = vpack.c.b16 %v577, %v576
  %v667 = vpack.c.b16 %v579, %v578
  %v668 = vpack.c.b16 %v581, %v580
  %v669 = vpack.c.b16 %v583, %v582
  %v670 = vpack.c.b16 %v585, %v584
  %v671 = vpack.c.b16 %v587, %v586
  %v672 = vpack.c.b16 %v589, %v588
  %v673 = vpack.c.b16 %v591, %v590
  %v674 = vpack.c.b16 %v593, %v592
  %v675 = vpack.c.b16 %v595, %v594
  %v676 = vpack.c.b16 %v597, %v596
  %v677 = vpack.c.b16 %v599, %v598
  %v678 = vpack.c.b16 %v601, %v600
  %v679 = vpack.c.b16 %v603, %v602
  %v680 = vpack.c.b16 %v605, %v604
  %v681 = vpack.c.b16 %v607, %v606
  %v682 = vpack.c.b16 %v609, %v608
  %v683 = vpack.c.b16 %v611, %v610
  %v684 = vpack.c.b16 %v613, %v612
  %v685 = vpack.c.b16 %v615, %v614
  %v686 = vpack.c.b16 %v617, %v616
  %v687 = vpack.c.b16 %v619, %v618
  %v688 = vpack.c.b16 %v621, %v620
  %v689 = vpack.c.b16 %v623, %v622
  %v690 = vpack.c.b16 %v625, %v624
  %v691 = vpack.c.b16 %v627, %v626
  %v692 = vpack.c.b16 %v629, %v628
  %v693 = vpack.c.b16 %v631, %v630
  %v694 = vpack.c.b16 %v633, %v632
  %v695 = vpack.c.b16 %v635, %v634
  %v696 = vpack.c.b16 %v637, %v636
  %v697 = vpack.c.b16 %v639, %v638
  %v698 = vpack.c.b16 %v641, %v640
  %v699 = vpack.c.b16 %v643, %v642
  %v700 = vpack.c.b16 %v645, %v644
  %v701 = vpack.c.b16 %v647, %v646
  %v702 = vpack.c.b16 %v649, %v648
  %v703 = vpack.c.b16 %v651, %v650
  %v704 = vpack.c.b16 %v653, %v652
  %v705 = vpack.c.b16 %v655, %v654
  %v706 = vpack.c.b16 %v657, %v656
  %vm756 = vcmask 130048
  %v758 = vsel %vm756, %v251, 0
  %v761 = vsel %vm756, %v258, 0
  %v764 = vsel %vm756, %v265, 0
  %v767 = vsel %vm756, %v272, 0
  %v770 = vsel %vm756, %v279, 0
  %v773 = vsel %vm756, %v286, 0
  %v776 = vsel %vm756, %v293, 0
  %v779 = vsel %vm756, %v300, 0
  %v782 = vsel %vm756, %v307, 0
  %v785 = vsel %vm756, %v314, 0
  %v788 = vsel %vm756, %v321, 0
  %v791 = vsel %vm756, %v328, 0
  %v794 = vsel %vm756, %v335, 0
  %v797 = vsel %vm756, %v342, 0
  %v800 = vsel %vm756, %v349, 0
  %v803 = vsel %vm756, %v356, 0
  %805 = vmatprep.subr.bf16.mxu0 0
  %806 = vmatpush1.bf16.msra.mxu0 %v665
  %807 = vmatprep.subr.bf16.mxu0 0
  %808 = vmatpush1.bf16.msra.mxu0 %v664
  %809 = vmatprep.subr.bf16.mxu0 0
  %810 = vmatpush1.bf16.msra.mxu0 %v663
  %811 = vmatprep.subr.bf16.mxu0 0
  %812 = vmatpush1.bf16.msra.mxu0 %v662
  %813 = vmatprep.subr.bf16.mxu0 0
  %814 = vmatpush1.bf16.msra.mxu0 %v661
  %815 = vmatprep.subr.bf16.mxu0 0
  %816 = vmatpush1.bf16.msra.mxu0 %v660
  %817 = vmatprep.subr.bf16.mxu0 0
  %818 = vmatpush1.bf16.msra.mxu0 %v659
  %819 = vmatprep.subr.bf16.mxu0 0
  %820 = vmatpush1.bf16.msra.mxu0 %v658
  %821 = vmatprep.subr.bf16.mxu0 0
  %822 = vmatpush2.bf16.msra.mxu0 %v673
  %823 = vmatprep.subr.bf16.mxu0 0
  %824 = vmatpush2.bf16.msra.mxu0 %v672
  %825 = vmatprep.subr.bf16.mxu0 0
  %826 = vmatpush2.bf16.msra.mxu0 %v671
  %827 = vmatprep.subr.bf16.mxu0 0
  %828 = vmatpush2.bf16.msra.mxu0 %v670
  %829 = vmatprep.subr.bf16.mxu0 0
  %830 = vmatpush2.bf16.msra.mxu0 %v669
  %831 = vmatprep.subr.bf16.mxu0 0
  %832 = vmatpush2.bf16.msra.mxu0 %v668
  %833 = vmatprep.subr.bf16.mxu0 0
  %834 = vmatpush2.bf16.msra.mxu0 %v667
  %835 = vmatprep.subr.bf16.mxu0 0
  %836 = vmatpush2.bf16.msra.mxu0 %v666
  %837 = vmatprep.mubr.bf16.mxu0 %v246
  %838 = vmatmul.mubr.bf16.gmra.mxu0 %v245
  %v839 = vpop.f32.mrf.mxu0
  %v840 = vadd.f32 %v460, %v839
  %v841 = vpop.f32.mrf.mxu0
  %v842 = vpop.f32.mrf.mxu0
  %v843 = vadd.f32 %v460, %v842
  %v844 = vpop.f32.mrf.mxu0
  %845 = vmatprep.mubr.bf16.mxu0 %v253
  %846 = vmatmul.mubr.bf16.gmra.mxu0 %v252
  %v847 = vpop.f32.mrf.mxu0
  %v848 = vadd.f32 %v460, %v847
  %v849 = vpop.f32.mrf.mxu0
  %v850 = vpop.f32.mrf.mxu0
  %v851 = vadd.f32 %v460, %v850
  %v852 = vpop.f32.mrf.mxu0
  %853 = vmatprep.mubr.bf16.mxu0 %v260
  %854 = vmatmul.mubr.bf16.gmra.mxu0 %v259
  %v855 = vpop.f32.mrf.mxu0
  %v856 = vadd.f32 %v460, %v855
  %v857 = vpop.f32.mrf.mxu0
  %v858 = vpop.f32.mrf.mxu0
  %v859 = vadd.f32 %v460, %v858
  %v860 = vpop.f32.mrf.mxu0
  %861 = vmatprep.mubr.bf16.mxu0 %v267
  %862 = vmatmul.mubr.bf16.gmra.mxu0 %v266
  %v863 = vpop.f32.mrf.mxu0
  %v864 = vadd.f32 %v460, %v863
  %v865 = vpop.f32.mrf.mxu0
  %v866 = vpop.f32.mrf.mxu0
  %v867 = vadd.f32 %v460, %v866
  %v868 = vpop.f32.mrf.mxu0
  %869 = vmatprep.mubr.bf16.mxu0 %v274
  %870 = vmatmul.mubr.bf16.gmra.mxu0 %v273
  %v871 = vpop.f32.mrf.mxu0
  %v872 = vadd.f32 %v460, %v871
  %v873 = vpop.f32.mrf.mxu0
  %v874 = vpop.f32.mrf.mxu0
  %v875 = vadd.f32 %v460, %v874
  %v876 = vpop.f32.mrf.mxu0
  %877 = vmatprep.mubr.bf16.mxu0 %v281
  %878 = vmatmul.mubr.bf16.gmra.mxu0 %v280
  %v879 = vpop.f32.mrf.mxu0
  %v880 = vadd.f32 %v460, %v879
  %v881 = vpop.f32.mrf.mxu0
  %v882 = vpop.f32.mrf.mxu0
  %v883 = vadd.f32 %v460, %v882
  %v884 = vpop.f32.mrf.mxu0
  %885 = vmatprep.mubr.bf16.mxu0 %v288
  %886 = vmatmul.mubr.bf16.gmra.mxu0 %v287
  %v887 = vpop.f32.mrf.mxu0
  %v888 = vadd.f32 %v460, %v887
  %v889 = vpop.f32.mrf.mxu0
  %v890 = vpop.f32.mrf.mxu0
  %v891 = vadd.f32 %v460, %v890
  %v892 = vpop.f32.mrf.mxu0
  %893 = vmatprep.mubr.bf16.mxu0 %v295
  %894 = vmatmul.mubr.bf16.gmra.mxu0 %v294
  %v895 = vpop.f32.mrf.mxu0
  %v896 = vadd.f32 %v460, %v895
  %v897 = vpop.f32.mrf.mxu0
  %v898 = vpop.f32.mrf.mxu0
  %v899 = vadd.f32 %v460, %v898
  %v900 = vpop.f32.mrf.mxu0
  %901 = vmatprep.mubr.bf16.mxu0 %v302
  %902 = vmatmul.mubr.bf16.gmra.mxu0 %v301
  %v903 = vpop.f32.mrf.mxu0
  %v904 = vadd.f32 %v460, %v903
  %v905 = vpop.f32.mrf.mxu0
  %v906 = vpop.f32.mrf.mxu0
  %v907 = vadd.f32 %v460, %v906
  %v908 = vpop.f32.mrf.mxu0
  %909 = vmatprep.mubr.bf16.mxu0 %v309
  %910 = vmatmul.mubr.bf16.gmra.mxu0 %v308
  %v911 = vpop.f32.mrf.mxu0
  %v912 = vadd.f32 %v460, %v911
  %v913 = vpop.f32.mrf.mxu0
  %v914 = vpop.f32.mrf.mxu0
  %v915 = vadd.f32 %v460, %v914
  %v916 = vpop.f32.mrf.mxu0
  %917 = vmatprep.mubr.bf16.mxu0 %v316
  %918 = vmatmul.mubr.bf16.gmra.mxu0 %v315
  %v919 = vpop.f32.mrf.mxu0
  %v920 = vadd.f32 %v460, %v919
  %v921 = vpop.f32.mrf.mxu0
  %v922 = vpop.f32.mrf.mxu0
  %v923 = vadd.f32 %v460, %v922
  %v924 = vpop.f32.mrf.mxu0
  %925 = vmatprep.mubr.bf16.mxu0 %v323
  %926 = vmatmul.mubr.bf16.gmra.mxu0 %v322
  %v927 = vpop.f32.mrf.mxu0
  %v928 = vadd.f32 %v460, %v927
  %v929 = vpop.f32.mrf.mxu0
  %v930 = vpop.f32.mrf.mxu0
  %v931 = vadd.f32 %v460, %v930
  %v932 = vpop.f32.mrf.mxu0
  %933 = vmatprep.mubr.bf16.mxu0 %v330
  %934 = vmatmul.mubr.bf16.gmra.mxu0 %v329
  %v935 = vpop.f32.mrf.mxu0
  %v936 = vadd.f32 %v460, %v935
  %v937 = vpop.f32.mrf.mxu0
  %v938 = vpop.f32.mrf.mxu0
  %v939 = vadd.f32 %v460, %v938
  %v940 = vpop.f32.mrf.mxu0
  %941 = vmatprep.mubr.bf16.mxu0 %v337
  %942 = vmatmul.mubr.bf16.gmra.mxu0 %v336
  %v943 = vpop.f32.mrf.mxu0
  %v944 = vadd.f32 %v460, %v943
  %v945 = vpop.f32.mrf.mxu0
  %v946 = vpop.f32.mrf.mxu0
  %v947 = vadd.f32 %v460, %v946
  %v948 = vpop.f32.mrf.mxu0
  %949 = vmatprep.mubr.bf16.mxu0 %v344
  %950 = vmatmul.mubr.bf16.gmra.mxu0 %v343
  %v951 = vpop.f32.mrf.mxu0
  %v952 = vadd.f32 %v460, %v951
  %v953 = vpop.f32.mrf.mxu0
  %v954 = vpop.f32.mrf.mxu0
  %v955 = vadd.f32 %v460, %v954
  %v956 = vpop.f32.mrf.mxu0
  %957 = vmatprep.mubr.bf16.mxu0 %v351
  %958 = vmatmul.mubr.bf16.gmra.mxu0 %v350
  %v959 = vpop.f32.mrf.mxu0
  %v960 = vadd.f32 %v460, %v959
  %v961 = vpop.f32.mrf.mxu0
  %v962 = vpop.f32.mrf.mxu0
  %v963 = vadd.f32 %v460, %v962
  %v964 = vpop.f32.mrf.mxu0
  %965 = vdwg.mxu0
  %966 = vmatprep.subr.bf16.mxu0 0
  %967 = vmatpush1.bf16.msra.mxu0 %v681
  %968 = vmatprep.subr.bf16.mxu0 0
  %969 = vmatpush1.bf16.msra.mxu0 %v680
  %970 = vmatprep.subr.bf16.mxu0 0
  %971 = vmatpush1.bf16.msra.mxu0 %v679
  %972 = vmatprep.subr.bf16.mxu0 0
  %973 = vmatpush1.bf16.msra.mxu0 %v678
  %974 = vmatprep.subr.bf16.mxu0 0
  %975 = vmatpush1.bf16.msra.mxu0 %v677
  %976 = vmatprep.subr.bf16.mxu0 0
  %977 = vmatpush1.bf16.msra.mxu0 %v676
  %978 = vmatprep.subr.bf16.mxu0 0
  %979 = vmatpush1.bf16.msra.mxu0 %v675
  %980 = vmatprep.subr.bf16.mxu0 0
  %981 = vmatpush1.bf16.msra.mxu0 %v674
  %982 = vmatprep.subr.bf16.mxu0 0
  %983 = vmatpush2.bf16.msra.mxu0 %v689
  %984 = vmatprep.subr.bf16.mxu0 0
  %985 = vmatpush2.bf16.msra.mxu0 %v688
  %986 = vmatprep.subr.bf16.mxu0 0
  %987 = vmatpush2.bf16.msra.mxu0 %v687
  %988 = vmatprep.subr.bf16.mxu0 0
  %989 = vmatpush2.bf16.msra.mxu0 %v686
  %990 = vmatprep.subr.bf16.mxu0 0
  %991 = vmatpush2.bf16.msra.mxu0 %v685
  %992 = vmatprep.subr.bf16.mxu0 0
  %993 = vmatpush2.bf16.msra.mxu0 %v684
  %994 = vmatprep.subr.bf16.mxu0 0
  %995 = vmatpush2.bf16.msra.mxu0 %v683
  %996 = vmatprep.subr.bf16.mxu0 0
  %997 = vmatpush2.bf16.msra.mxu0 %v682
  %998 = vmatprep.mubr.bf16.mxu0 %v248
  %999 = vmatmul.mubr.bf16.gmra.mxu0 %v247
  %v1000 = vpop.f32.mrf.mxu0
  %v1001 = vadd.f32 %v840, %v1000
  %v1002 = vpop.f32.mrf.mxu0
  %v1003 = vpop.f32.mrf.mxu0
  %v1004 = vadd.f32 %v843, %v1003
  %v1005 = vpop.f32.mrf.mxu0
  %1006 = vmatprep.mubr.bf16.mxu0 %v255
  %1007 = vmatmul.mubr.bf16.gmra.mxu0 %v254
  %v1008 = vpop.f32.mrf.mxu0
  %v1009 = vadd.f32 %v848, %v1008
  %v1010 = vpop.f32.mrf.mxu0
  %v1011 = vpop.f32.mrf.mxu0
  %v1012 = vadd.f32 %v851, %v1011
  %v1013 = vpop.f32.mrf.mxu0
  %1014 = vmatprep.mubr.bf16.mxu0 %v262
  %1015 = vmatmul.mubr.bf16.gmra.mxu0 %v261
  %v1016 = vpop.f32.mrf.mxu0
  %v1017 = vadd.f32 %v856, %v1016
  %v1018 = vpop.f32.mrf.mxu0
  %v1019 = vpop.f32.mrf.mxu0
  %v1020 = vadd.f32 %v859, %v1019
  %v1021 = vpop.f32.mrf.mxu0
  %1022 = vmatprep.mubr.bf16.mxu0 %v269
  %1023 = vmatmul.mubr.bf16.gmra.mxu0 %v268
  %v1024 = vpop.f32.mrf.mxu0
  %v1025 = vadd.f32 %v864, %v1024
  %v1026 = vpop.f32.mrf.mxu0
  %v1027 = vpop.f32.mrf.mxu0
  %v1028 = vadd.f32 %v867, %v1027
  %v1029 = vpop.f32.mrf.mxu0
  %1030 = vmatprep.mubr.bf16.mxu0 %v276
  %1031 = vmatmul.mubr.bf16.gmra.mxu0 %v275
  %v1032 = vpop.f32.mrf.mxu0
  %v1033 = vadd.f32 %v872, %v1032
  %v1034 = vpop.f32.mrf.mxu0
  %v1035 = vpop.f32.mrf.mxu0
  %v1036 = vadd.f32 %v875, %v1035
  %v1037 = vpop.f32.mrf.mxu0
  %1038 = vmatprep.mubr.bf16.mxu0 %v283
  %1039 = vmatmul.mubr.bf16.gmra.mxu0 %v282
  %v1040 = vpop.f32.mrf.mxu0
  %v1041 = vadd.f32 %v880, %v1040
  %v1042 = vpop.f32.mrf.mxu0
  %v1043 = vpop.f32.mrf.mxu0
  %v1044 = vadd.f32 %v883, %v1043
  %v1045 = vpop.f32.mrf.mxu0
  %1046 = vmatprep.mubr.bf16.mxu0 %v290
  %1047 = vmatmul.mubr.bf16.gmra.mxu0 %v289
  %v1048 = vpop.f32.mrf.mxu0
  %v1049 = vadd.f32 %v888, %v1048
  %v1050 = vpop.f32.mrf.mxu0
  %v1051 = vpop.f32.mrf.mxu0
  %v1052 = vadd.f32 %v891, %v1051
  %v1053 = vpop.f32.mrf.mxu0
  %1054 = vmatprep.mubr.bf16.mxu0 %v297
  %1055 = vmatmul.mubr.bf16.gmra.mxu0 %v296
  %v1056 = vpop.f32.mrf.mxu0
  %v1057 = vadd.f32 %v896, %v1056
  %v1058 = vpop.f32.mrf.mxu0
  %v1059 = vpop.f32.mrf.mxu0
  %v1060 = vadd.f32 %v899, %v1059
  %v1061 = vpop.f32.mrf.mxu0
  %1062 = vmatprep.mubr.bf16.mxu0 %v304
  %1063 = vmatmul.mubr.bf16.gmra.mxu0 %v303
  %v1064 = vpop.f32.mrf.mxu0
  %v1065 = vadd.f32 %v904, %v1064
  %v1066 = vpop.f32.mrf.mxu0
  %v1067 = vpop.f32.mrf.mxu0
  %v1068 = vadd.f32 %v907, %v1067
  %v1069 = vpop.f32.mrf.mxu0
  %1070 = vmatprep.mubr.bf16.mxu0 %v311
  %1071 = vmatmul.mubr.bf16.gmra.mxu0 %v310
  %v1072 = vpop.f32.mrf.mxu0
  %v1073 = vadd.f32 %v912, %v1072
  %v1074 = vpop.f32.mrf.mxu0
  %v1075 = vpop.f32.mrf.mxu0
  %v1076 = vadd.f32 %v915, %v1075
  %v1077 = vpop.f32.mrf.mxu0
  %1078 = vmatprep.mubr.bf16.mxu0 %v318
  %1079 = vmatmul.mubr.bf16.gmra.mxu0 %v317
  %v1080 = vpop.f32.mrf.mxu0
  %v1081 = vadd.f32 %v920, %v1080
  %v1082 = vpop.f32.mrf.mxu0
  %v1083 = vpop.f32.mrf.mxu0
  %v1084 = vadd.f32 %v923, %v1083
  %v1085 = vpop.f32.mrf.mxu0
  %1086 = vmatprep.mubr.bf16.mxu0 %v325
  %1087 = vmatmul.mubr.bf16.gmra.mxu0 %v324
  %v1088 = vpop.f32.mrf.mxu0
  %v1089 = vadd.f32 %v928, %v1088
  %v1090 = vpop.f32.mrf.mxu0
  %v1091 = vpop.f32.mrf.mxu0
  %v1092 = vadd.f32 %v931, %v1091
  %v1093 = vpop.f32.mrf.mxu0
  %1094 = vmatprep.mubr.bf16.mxu0 %v332
  %1095 = vmatmul.mubr.bf16.gmra.mxu0 %v331
  %v1096 = vpop.f32.mrf.mxu0
  %v1097 = vadd.f32 %v936, %v1096
  %v1098 = vpop.f32.mrf.mxu0
  %v1099 = vpop.f32.mrf.mxu0
  %v1100 = vadd.f32 %v939, %v1099
  %v1101 = vpop.f32.mrf.mxu0
  %1102 = vmatprep.mubr.bf16.mxu0 %v339
  %1103 = vmatmul.mubr.bf16.gmra.mxu0 %v338
  %v1104 = vpop.f32.mrf.mxu0
  %v1105 = vadd.f32 %v944, %v1104
  %v1106 = vpop.f32.mrf.mxu0
  %v1107 = vpop.f32.mrf.mxu0
  %v1108 = vadd.f32 %v947, %v1107
  %v1109 = vpop.f32.mrf.mxu0
  %1110 = vmatprep.mubr.bf16.mxu0 %v346
  %1111 = vmatmul.mubr.bf16.gmra.mxu0 %v345
  %v1112 = vpop.f32.mrf.mxu0
  %v1113 = vadd.f32 %v952, %v1112
  %v1114 = vpop.f32.mrf.mxu0
  %v1115 = vpop.f32.mrf.mxu0
  %v1116 = vadd.f32 %v955, %v1115
  %v1117 = vpop.f32.mrf.mxu0
  %1118 = vmatprep.mubr.bf16.mxu0 %v353
  %1119 = vmatmul.mubr.bf16.gmra.mxu0 %v352
  %v1120 = vpop.f32.mrf.mxu0
  %v1121 = vadd.f32 %v960, %v1120
  %v1122 = vpop.f32.mrf.mxu0
  %v1123 = vpop.f32.mrf.mxu0
  %v1124 = vadd.f32 %v963, %v1123
  %v1125 = vpop.f32.mrf.mxu0
  %1126 = vdwg.mxu0
  %1127 = vmatprep.subr.bf16.mxu0 0
  %1128 = vmatpush1.bf16.msra.mxu0 %v697
  %1129 = vmatprep.subr.bf16.mxu0 0
  %1130 = vmatpush1.bf16.msra.mxu0 %v696
  %1131 = vmatprep.subr.bf16.mxu0 0
  %1132 = vmatpush1.bf16.msra.mxu0 %v695
  %1133 = vmatprep.subr.bf16.mxu0 0
  %1134 = vmatpush1.bf16.msra.mxu0 %v694
  %1135 = vmatprep.subr.bf16.mxu0 0
  %1136 = vmatpush1.bf16.msra.mxu0 %v693
  %1137 = vmatprep.subr.bf16.mxu0 0
  %1138 = vmatpush1.bf16.msra.mxu0 %v692
  %1139 = vmatprep.subr.bf16.mxu0 0
  %1140 = vmatpush1.bf16.msra.mxu0 %v691
  %1141 = vmatprep.subr.bf16.mxu0 0
  %1142 = vmatpush1.bf16.msra.mxu0 %v690
  %1143 = vmatprep.subr.bf16.mxu0 0
  %1144 = vmatpush2.bf16.msra.mxu0 %v705
  %1145 = vmatprep.subr.bf16.mxu0 0
  %1146 = vmatpush2.bf16.msra.mxu0 %v704
  %1147 = vmatprep.subr.bf16.mxu0 0
  %1148 = vmatpush2.bf16.msra.mxu0 %v703
  %1149 = vmatprep.subr.bf16.mxu0 0
  %1150 = vmatpush2.bf16.msra.mxu0 %v702
  %1151 = vmatprep.subr.bf16.mxu0 0
  %1152 = vmatpush2.bf16.msra.mxu0 %v701
  %1153 = vmatprep.subr.bf16.mxu0 0
  %1154 = vmatpush2.bf16.msra.mxu0 %v700
  %1155 = vmatprep.subr.bf16.mxu0 0
  %1156 = vmatpush2.bf16.msra.mxu0 %v699
  %1157 = vmatprep.subr.bf16.mxu0 0
  %1158 = vmatpush2.bf16.msra.mxu0 %v698
  %1159 = vmatprep.mubr.bf16.mxu0 %v250
  %1160 = vmatmul.mubr.bf16.gmra.mxu0 %v249
  %v1161 = vpop.f32.mrf.mxu0
  %v1162 = vadd.f32 %v1001, %v1161
  %v1163 = vpop.f32.mrf.mxu0
  %v1164 = vpop.f32.mrf.mxu0
  %v1165 = vadd.f32 %v1004, %v1164
  %v1166 = vpop.f32.mrf.mxu0
  %1167 = vmatprep.mubr.bf16.mxu0 %v257
  %1168 = vmatmul.mubr.bf16.gmra.mxu0 %v256
  %v1169 = vpop.f32.mrf.mxu0
  %v1170 = vadd.f32 %v1009, %v1169
  %v1171 = vpop.f32.mrf.mxu0
  %v1172 = vpop.f32.mrf.mxu0
  %v1173 = vadd.f32 %v1012, %v1172
  %v1174 = vpop.f32.mrf.mxu0
  %1175 = vmatprep.mubr.bf16.mxu0 %v264
  %1176 = vmatmul.mubr.bf16.gmra.mxu0 %v263
  %v1177 = vpop.f32.mrf.mxu0
  %v1178 = vadd.f32 %v1017, %v1177
  %v1179 = vpop.f32.mrf.mxu0
  %v1180 = vpop.f32.mrf.mxu0
  %v1181 = vadd.f32 %v1020, %v1180
  %v1182 = vpop.f32.mrf.mxu0
  %1183 = vmatprep.mubr.bf16.mxu0 %v271
  %1184 = vmatmul.mubr.bf16.gmra.mxu0 %v270
  %v1185 = vpop.f32.mrf.mxu0
  %v1186 = vadd.f32 %v1025, %v1185
  %v1187 = vpop.f32.mrf.mxu0
  %v1188 = vpop.f32.mrf.mxu0
  %v1189 = vadd.f32 %v1028, %v1188
  %v1190 = vpop.f32.mrf.mxu0
  %1191 = vmatprep.mubr.bf16.mxu0 %v278
  %1192 = vmatmul.mubr.bf16.gmra.mxu0 %v277
  %v1193 = vpop.f32.mrf.mxu0
  %v1194 = vadd.f32 %v1033, %v1193
  %v1195 = vpop.f32.mrf.mxu0
  %v1196 = vpop.f32.mrf.mxu0
  %v1197 = vadd.f32 %v1036, %v1196
  %v1198 = vpop.f32.mrf.mxu0
  %1199 = vmatprep.mubr.bf16.mxu0 %v285
  %1200 = vmatmul.mubr.bf16.gmra.mxu0 %v284
  %v1201 = vpop.f32.mrf.mxu0
  %v1202 = vadd.f32 %v1041, %v1201
  %v1203 = vpop.f32.mrf.mxu0
  %v1204 = vpop.f32.mrf.mxu0
  %v1205 = vadd.f32 %v1044, %v1204
  %v1206 = vpop.f32.mrf.mxu0
  %1207 = vmatprep.mubr.bf16.mxu0 %v292
  %1208 = vmatmul.mubr.bf16.gmra.mxu0 %v291
  %v1209 = vpop.f32.mrf.mxu0
  %v1210 = vadd.f32 %v1049, %v1209
  %v1211 = vpop.f32.mrf.mxu0
  %v1212 = vpop.f32.mrf.mxu0
  %v1213 = vadd.f32 %v1052, %v1212
  %v1214 = vpop.f32.mrf.mxu0
  %1215 = vmatprep.mubr.bf16.mxu0 %v299
  %1216 = vmatmul.mubr.bf16.gmra.mxu0 %v298
  %v1217 = vpop.f32.mrf.mxu0
  %v1218 = vadd.f32 %v1057, %v1217
  %v1219 = vpop.f32.mrf.mxu0
  %v1220 = vpop.f32.mrf.mxu0
  %v1221 = vadd.f32 %v1060, %v1220
  %v1222 = vpop.f32.mrf.mxu0
  %1223 = vmatprep.mubr.bf16.mxu0 %v306
  %1224 = vmatmul.mubr.bf16.gmra.mxu0 %v305
  %v1225 = vpop.f32.mrf.mxu0
  %v1226 = vadd.f32 %v1065, %v1225
  %v1227 = vpop.f32.mrf.mxu0
  %v1228 = vpop.f32.mrf.mxu0
  %v1229 = vadd.f32 %v1068, %v1228
  %v1230 = vpop.f32.mrf.mxu0
  %1231 = vmatprep.mubr.bf16.mxu0 %v313
  %1232 = vmatmul.mubr.bf16.gmra.mxu0 %v312
  %v1233 = vpop.f32.mrf.mxu0
  %v1234 = vadd.f32 %v1073, %v1233
  %v1235 = vpop.f32.mrf.mxu0
  %v1236 = vpop.f32.mrf.mxu0
  %v1237 = vadd.f32 %v1076, %v1236
  %v1238 = vpop.f32.mrf.mxu0
  %1239 = vmatprep.mubr.bf16.mxu0 %v320
  %1240 = vmatmul.mubr.bf16.gmra.mxu0 %v319
  %v1241 = vpop.f32.mrf.mxu0
  %v1242 = vadd.f32 %v1081, %v1241
  %v1243 = vpop.f32.mrf.mxu0
  %v1244 = vpop.f32.mrf.mxu0
  %v1245 = vadd.f32 %v1084, %v1244
  %v1246 = vpop.f32.mrf.mxu0
  %1247 = vmatprep.mubr.bf16.mxu0 %v327
  %1248 = vmatmul.mubr.bf16.gmra.mxu0 %v326
  %v1249 = vpop.f32.mrf.mxu0
  %v1250 = vadd.f32 %v1089, %v1249
  %v1251 = vpop.f32.mrf.mxu0
  %v1252 = vpop.f32.mrf.mxu0
  %v1253 = vadd.f32 %v1092, %v1252
  %v1254 = vpop.f32.mrf.mxu0
  %1255 = vmatprep.mubr.bf16.mxu0 %v334
  %1256 = vmatmul.mubr.bf16.gmra.mxu0 %v333
  %v1257 = vpop.f32.mrf.mxu0
  %v1258 = vadd.f32 %v1097, %v1257
  %v1259 = vpop.f32.mrf.mxu0
  %v1260 = vpop.f32.mrf.mxu0
  %v1261 = vadd.f32 %v1100, %v1260
  %v1262 = vpop.f32.mrf.mxu0
  %1263 = vmatprep.mubr.bf16.mxu0 %v341
  %1264 = vmatmul.mubr.bf16.gmra.mxu0 %v340
  %v1265 = vpop.f32.mrf.mxu0
  %v1266 = vadd.f32 %v1105, %v1265
  %v1267 = vpop.f32.mrf.mxu0
  %v1268 = vpop.f32.mrf.mxu0
  %v1269 = vadd.f32 %v1108, %v1268
  %v1270 = vpop.f32.mrf.mxu0
  %1271 = vmatprep.mubr.bf16.mxu0 %v348
  %1272 = vmatmul.mubr.bf16.gmra.mxu0 %v347
  %v1273 = vpop.f32.mrf.mxu0
  %v1274 = vadd.f32 %v1113, %v1273
  %v1275 = vpop.f32.mrf.mxu0
  %v1276 = vpop.f32.mrf.mxu0
  %v1277 = vadd.f32 %v1116, %v1276
  %v1278 = vpop.f32.mrf.mxu0
  %1279 = vmatprep.mubr.bf16.mxu0 %v355
  %1280 = vmatmul.mubr.bf16.gmra.mxu0 %v354
  %v1281 = vpop.f32.mrf.mxu0
  %v1282 = vadd.f32 %v1121, %v1281
  %v1283 = vpop.f32.mrf.mxu0
  %v1284 = vpop.f32.mrf.mxu0
  %v1285 = vadd.f32 %v1124, %v1284
  %v1286 = vpop.f32.mrf.mxu0
  %1287 = vdwg.mxu0
  %1288 = vmatprep.subr.bf16.mxu0 0
  %1289 = vmatpush1.bf16.msra.mxu0 0
  %1290 = vmatprep.subr.bf16.mxu0 0
  %1291 = vmatpush1.bf16.msra.mxu0 0
  %1292 = vmatprep.subr.bf16.mxu0 0
  %1293 = vmatpush1.bf16.msra.mxu0 0
  %1294 = vmatprep.subr.bf16.mxu0 0
  %1295 = vmatpush1.bf16.msra.mxu0 0
  %1296 = vmatprep.subr.bf16.mxu0 0
  %1297 = vmatpush1.bf16.msra.mxu0 0
  %1298 = vmatprep.subr.bf16.mxu0 0
  %1299 = vmatpush1.bf16.msra.mxu0 0
  %1300 = vmatprep.subr.bf16.mxu0 0
  %1301 = vmatpush1.bf16.msra.mxu0 0
  %1302 = vmatprep.subr.bf16.mxu0 0
  %1303 = vmatpush1.bf16.msra.mxu0 %v706
  %1304 = vmatprep.subr.bf16.mxu0 0
  %1305 = vmatpush2.bf16.msra.mxu0 0
  %1306 = vmatprep.subr.bf16.mxu0 0
  %1307 = vmatpush2.bf16.msra.mxu0 0
  %1308 = vmatprep.subr.bf16.mxu0 0
  %1309 = vmatpush2.bf16.msra.mxu0 0
  %1310 = vmatprep.subr.bf16.mxu0 0
  %1311 = vmatpush2.bf16.msra.mxu0 0
  %1312 = vmatprep.subr.bf16.mxu0 0
  %1313 = vmatpush2.bf16.msra.mxu0 0
  %1314 = vmatprep.subr.bf16.mxu0 0
  %1315 = vmatpush2.bf16.msra.mxu0 0
  %1316 = vmatprep.subr.bf16.mxu0 0
  %1317 = vmatpush2.bf16.msra.mxu0 0
  %1318 = vmatprep.subr.bf16.mxu0 0
  %1319 = vmatpush2.bf16.msra.mxu0 0
  %1320 = vmatprep.mubr.bf16.mxu0 0
  %1321 = vmatmul.mubr.bf16.gmra.mxu0 %v758
  %v1322 = vpop.f32.mrf.mxu0
  %v1323 = vadd.f32 %v1162, %v1322
  %v1324 = vpop.f32.mrf.mxu0
  %v1325 = vpop.f32.mrf.mxu0
  %v1326 = vadd.f32 %v1165, %v1325
  %v1327 = vpop.f32.mrf.mxu0
  %1328 = vmatprep.mubr.bf16.mxu0 0
  %1329 = vmatmul.mubr.bf16.gmra.mxu0 %v761
  %v1330 = vpop.f32.mrf.mxu0
  %v1331 = vadd.f32 %v1170, %v1330
  %v1332 = vpop.f32.mrf.mxu0
  %v1333 = vpop.f32.mrf.mxu0
  %v1334 = vadd.f32 %v1173, %v1333
  %v1335 = vpop.f32.mrf.mxu0
  %1336 = vmatprep.mubr.bf16.mxu0 0
  %1337 = vmatmul.mubr.bf16.gmra.mxu0 %v764
  %v1338 = vpop.f32.mrf.mxu0
  %v1339 = vadd.f32 %v1178, %v1338
  %v1340 = vpop.f32.mrf.mxu0
  %v1341 = vpop.f32.mrf.mxu0
  %v1342 = vadd.f32 %v1181, %v1341
  %v1343 = vpop.f32.mrf.mxu0
  %1344 = vmatprep.mubr.bf16.mxu0 0
  %1345 = vmatmul.mubr.bf16.gmra.mxu0 %v767
  %v1346 = vpop.f32.mrf.mxu0
  %v1347 = vadd.f32 %v1186, %v1346
  %v1348 = vpop.f32.mrf.mxu0
  %v1349 = vpop.f32.mrf.mxu0
  %v1350 = vadd.f32 %v1189, %v1349
  %v1351 = vpop.f32.mrf.mxu0
  %1352 = vmatprep.mubr.bf16.mxu0 0
  %1353 = vmatmul.mubr.bf16.gmra.mxu0 %v770
  %v1354 = vpop.f32.mrf.mxu0
  %v1355 = vadd.f32 %v1194, %v1354
  %v1356 = vpop.f32.mrf.mxu0
  %v1357 = vpop.f32.mrf.mxu0
  %v1358 = vadd.f32 %v1197, %v1357
  %v1359 = vpop.f32.mrf.mxu0
  %1360 = vmatprep.mubr.bf16.mxu0 0
  %1361 = vmatmul.mubr.bf16.gmra.mxu0 %v773
  %v1362 = vpop.f32.mrf.mxu0
  %v1363 = vadd.f32 %v1202, %v1362
  %v1364 = vpop.f32.mrf.mxu0
  %v1365 = vpop.f32.mrf.mxu0
  %v1366 = vadd.f32 %v1205, %v1365
  %v1367 = vpop.f32.mrf.mxu0
  %1368 = vmatprep.mubr.bf16.mxu0 0
  %1369 = vmatmul.mubr.bf16.gmra.mxu0 %v776
  %v1370 = vpop.f32.mrf.mxu0
  %v1371 = vadd.f32 %v1210, %v1370
  %v1372 = vpop.f32.mrf.mxu0
  %v1373 = vpop.f32.mrf.mxu0
  %v1374 = vadd.f32 %v1213, %v1373
  %v1375 = vpop.f32.mrf.mxu0
  %1376 = vmatprep.mubr.bf16.mxu0 0
  %1377 = vmatmul.mubr.bf16.gmra.mxu0 %v779
  %v1378 = vpop.f32.mrf.mxu0
  %v1379 = vadd.f32 %v1218, %v1378
  %v1380 = vpop.f32.mrf.mxu0
  %v1381 = vpop.f32.mrf.mxu0
  %v1382 = vadd.f32 %v1221, %v1381
  %v1383 = vpop.f32.mrf.mxu0
  %1384 = vmatprep.mubr.bf16.mxu0 0
  %1385 = vmatmul.mubr.bf16.gmra.mxu0 %v782
  %v1386 = vpop.f32.mrf.mxu0
  %v1387 = vadd.f32 %v1226, %v1386
  %v1388 = vpop.f32.mrf.mxu0
  %v1389 = vpop.f32.mrf.mxu0
  %v1390 = vadd.f32 %v1229, %v1389
  %v1391 = vpop.f32.mrf.mxu0
  %1392 = vmatprep.mubr.bf16.mxu0 0
  %1393 = vmatmul.mubr.bf16.gmra.mxu0 %v785
  %v1394 = vpop.f32.mrf.mxu0
  %v1395 = vadd.f32 %v1234, %v1394
  %v1396 = vpop.f32.mrf.mxu0
  %v1397 = vpop.f32.mrf.mxu0
  %v1398 = vadd.f32 %v1237, %v1397
  %v1399 = vpop.f32.mrf.mxu0
  %1400 = vmatprep.mubr.bf16.mxu0 0
  %1401 = vmatmul.mubr.bf16.gmra.mxu0 %v788
  %v1402 = vpop.f32.mrf.mxu0
  %v1403 = vadd.f32 %v1242, %v1402
  %v1404 = vpop.f32.mrf.mxu0
  %v1405 = vpop.f32.mrf.mxu0
  %v1406 = vadd.f32 %v1245, %v1405
  %v1407 = vpop.f32.mrf.mxu0
  %1408 = vmatprep.mubr.bf16.mxu0 0
  %1409 = vmatmul.mubr.bf16.gmra.mxu0 %v791
  %v1410 = vpop.f32.mrf.mxu0
  %v1411 = vadd.f32 %v1250, %v1410
  %v1412 = vpop.f32.mrf.mxu0
  %v1413 = vpop.f32.mrf.mxu0
  %v1414 = vadd.f32 %v1253, %v1413
  %v1415 = vpop.f32.mrf.mxu0
  %1416 = vmatprep.mubr.bf16.mxu0 0
  %1417 = vmatmul.mubr.bf16.gmra.mxu0 %v794
  %v1418 = vpop.f32.mrf.mxu0
  %v1419 = vadd.f32 %v1258, %v1418
  %v1420 = vpop.f32.mrf.mxu0
  %v1421 = vpop.f32.mrf.mxu0
  %v1422 = vadd.f32 %v1261, %v1421
  %v1423 = vpop.f32.mrf.mxu0
  %1424 = vmatprep.mubr.bf16.mxu0 0
  %1425 = vmatmul.mubr.bf16.gmra.mxu0 %v797
  %v1426 = vpop.f32.mrf.mxu0
  %v1427 = vadd.f32 %v1266, %v1426
  %v1428 = vpop.f32.mrf.mxu0
  %v1429 = vpop.f32.mrf.mxu0
  %v1430 = vadd.f32 %v1269, %v1429
  %v1431 = vpop.f32.mrf.mxu0
  %1432 = vmatprep.mubr.bf16.mxu0 0
  %1433 = vmatmul.mubr.bf16.gmra.mxu0 %v800
  %v1434 = vpop.f32.mrf.mxu0
  %v1435 = vadd.f32 %v1274, %v1434
  %v1436 = vpop.f32.mrf.mxu0
  %v1437 = vpop.f32.mrf.mxu0
  %v1438 = vadd.f32 %v1277, %v1437
  %v1439 = vpop.f32.mrf.mxu0
  %1440 = vmatprep.mubr.bf16.mxu0 0
  %1441 = vmatmul.mubr.bf16.gmra.mxu0 %v803
  %v1442 = vpop.f32.mrf.mxu0
  %v1443 = vadd.f32 %v1282, %v1442
  %v1444 = vpop.f32.mrf.mxu0
  %v1445 = vpop.f32.mrf.mxu0
  %v1446 = vadd.f32 %v1285, %v1445
  %v1447 = vpop.f32.mrf.mxu0
  %1448 = vdwg.mxu0
  %v1449 = vmax.f32 %v1323, 0.0
  %v1450 = vmax.f32 %v1326, 0.0
  %v1451 = vmax.f32 %v1331, 0.0
  %v1452 = vmax.f32 %v1334, 0.0
  %v1453 = vmax.f32 %v1339, 0.0
  %v1454 = vmax.f32 %v1342, 0.0
  %v1455 = vmax.f32 %v1347, 0.0
  %v1456 = vmax.f32 %v1350, 0.0
  %v1457 = vmax.f32 %v1355, 0.0
  %v1458 = vmax.f32 %v1358, 0.0
  %v1459 = vmax.f32 %v1363, 0.0
  %v1460 = vmax.f32 %v1366, 0.0
  %v1461 = vmax.f32 %v1371, 0.0
  %v1462 = vmax.f32 %v1374, 0.0
  %v1463 = vmax.f32 %v1379, 0.0
  %v1464 = vmax.f32 %v1382, 0.0
  %v1465 = vmax.f32 %v1387, 0.0
  %v1466 = vmax.f32 %v1390, 0.0
  %v1467 = vmax.f32 %v1395, 0.0
  %v1468 = vmax.f32 %v1398, 0.0
  %v1469 = vmax.f32 %v1403, 0.0
  %v1470 = vmax.f32 %v1406, 0.0
  %v1471 = vmax.f32 %v1411, 0.0
  %v1472 = vmax.f32 %v1414, 0.0
  %v1473 = vmax.f32 %v1419, 0.0
  %v1474 = vmax.f32 %v1422, 0.0
  %v1475 = vmax.f32 %v1427, 0.0
  %v1476 = vmax.f32 %v1430, 0.0
  %v1477 = vmax.f32 %v1435, 0.0
  %v1478 = vmax.f32 %v1438, 0.0
  %v1479 = vmax.f32 %v1443, 0.0
  %v1480 = vmax.f32 %v1446, 0.0
  %v1481 = vpack.c.bf16 %v1450, %v1449
  %v1482 = vpack.c.bf16 %v1452, %v1451
  %v1483 = vpack.c.bf16 %v1454, %v1453
  %v1484 = vpack.c.bf16 %v1456, %v1455
  %v1485 = vpack.c.bf16 %v1458, %v1457
  %v1486 = vpack.c.bf16 %v1460, %v1459
  %v1487 = vpack.c.bf16 %v1462, %v1461
  %v1488 = vpack.c.bf16 %v1464, %v1463
  %v1489 = vpack.c.bf16 %v1466, %v1465
  %v1490 = vpack.c.bf16 %v1468, %v1467
  %v1491 = vpack.c.bf16 %v1470, %v1469
  %v1492 = vpack.c.bf16 %v1472, %v1471
  %v1493 = vpack.c.bf16 %v1474, %v1473
  %v1494 = vpack.c.bf16 %v1476, %v1475
  %v1495 = vpack.c.bf16 %v1478, %v1477
  %v1496 = vpack.c.bf16 %v1480, %v1479
  %v1497 = vld [vmem:[%s3] sm:$0xf]
  %v1498 = vld [vmem:[%s3 + $0x4] sm:$0xf]
  %v1499 = vld [vmem:[%s3 + $0x8] sm:$0xf]
  %v1500 = vld [vmem:[%s3 + $0xc] sm:$0xf]
  %v1501 = vld [vmem:[%s3 + $0x10] sm:$0xf]
  %v1502 = vld [vmem:[%s3 + $0x14] sm:$0xf]
  %v1503 = vld [vmem:[%s3 + $0x18] sm:$0xf]
  %v1504 = vld [vmem:[%s3 + $0x1c] sm:$0xf]
  %v1505 = vld [vmem:[%s3 + $0x20] sm:$0xf]
  %v1506 = vld [vmem:[%s3 + $0x24] sm:$0xf]
  %v1507 = vld [vmem:[%s3 + $0x28] sm:$0xf]
  %v1508 = vld [vmem:[%s3 + $0x2c] sm:$0xf]
  %v1509 = vld [vmem:[%s3 + $0x30] sm:$0xf]
  %v1510 = vld [vmem:[%s3 + $0x34] sm:$0xf]
  %v1511 = vld [vmem:[%s3 + $0x38] sm:$0xf]
  %v1512 = vld [vmem:[%s3 + $0x3c] sm:$0xf]
  %v1513 = vld [vmem:[%s4] sm:$0x1]
  %v1515 = vlaneseq
  %v1516 = vshrl.u32 %v1515, 7
  %v1517 = vsub.s32 0, %v1516
  %v1518 = vrot.slane %v1513, %v1517
  %v1536 = vunpack.c.l.b16 %v1497
  %v1537 = vunpack.c.l.b16 %v1498
  %v1538 = vunpack.c.l.b16 %v1499
  %v1539 = vunpack.c.l.b16 %v1500
  %v1540 = vunpack.c.l.b16 %v1501
  %v1541 = vunpack.c.l.b16 %v1502
  %v1542 = vunpack.c.l.b16 %v1503
  %v1543 = vunpack.c.l.b16 %v1504
  %v1544 = vunpack.c.l.b16 %v1505
  %v1545 = vunpack.c.l.b16 %v1506
  %v1546 = vunpack.c.l.b16 %v1507
  %v1547 = vunpack.c.l.b16 %v1508
  %v1548 = vunpack.c.l.b16 %v1509
  %v1549 = vunpack.c.l.b16 %v1510
  %v1550 = vunpack.c.l.b16 %v1511
  %v1551 = vunpack.c.l.b16 %v1512
  %v1552 = vpack.c.b16 %v1537, %v1536
  %v1553 = vpack.c.b16 %v1539, %v1538
  %v1554 = vpack.c.b16 %v1541, %v1540
  %v1555 = vpack.c.b16 %v1543, %v1542
  %v1556 = vpack.c.b16 %v1545, %v1544
  %v1557 = vpack.c.b16 %v1547, %v1546
  %v1558 = vpack.c.b16 %v1549, %v1548
  %v1559 = vpack.c.b16 %v1551, %v1550
  %1568 = vmatprep.subr.bf16.mxu0 0
  %1569 = vmatpush1.bf16.msra.mxu0 %v1559
  %1570 = vmatprep.subr.bf16.mxu0 0
  %1571 = vmatpush1.bf16.msra.mxu0 %v1558
  %1572 = vmatprep.subr.bf16.mxu0 0
  %1573 = vmatpush1.bf16.msra.mxu0 %v1557
  %1574 = vmatprep.subr.bf16.mxu0 0
  %1575 = vmatpush1.bf16.msra.mxu0 %v1556
  %1576 = vmatprep.subr.bf16.mxu0 0
  %1577 = vmatpush1.bf16.msra.mxu0 %v1555
  %1578 = vmatprep.subr.bf16.mxu0 0
  %1579 = vmatpush1.bf16.msra.mxu0 %v1554
  %1580 = vmatprep.subr.bf16.mxu0 0
  %1581 = vmatpush1.bf16.msra.mxu0 %v1553
  %1582 = vmatprep.subr.bf16.mxu0 0
  %1583 = vmatpush1.bf16.msra.mxu0 %v1552
  %1584 = vmatprep.subr.bf16.mxu0 0
  %1585 = vmatpush2.bf16.msra.mxu0 0
  %1586 = vmatprep.subr.bf16.mxu0 0
  %1587 = vmatpush2.bf16.msra.mxu0 0
  %1588 = vmatprep.subr.bf16.mxu0 0
  %1589 = vmatpush2.bf16.msra.mxu0 0
  %1590 = vmatprep.subr.bf16.mxu0 0
  %1591 = vmatpush2.bf16.msra.mxu0 0
  %1592 = vmatprep.subr.bf16.mxu0 0
  %1593 = vmatpush2.bf16.msra.mxu0 0
  %1594 = vmatprep.subr.bf16.mxu0 0
  %1595 = vmatpush2.bf16.msra.mxu0 0
  %1596 = vmatprep.subr.bf16.mxu0 0
  %1597 = vmatpush2.bf16.msra.mxu0 0
  %1598 = vmatprep.subr.bf16.mxu0 0
  %1599 = vmatpush2.bf16.msra.mxu0 0
  %1600 = vmatprep.mubr.bf16.mxu0 0
  %1601 = vmatmul.mubr.bf16.gmra.mxu0 %v1481
  %v1602 = vpop.f32.mrf.mxu0
  %v1603 = vadd.f32 %v1518, %v1602
  %v1604 = vpop.f32.mrf.mxu0
  %v1605 = vpop.f32.mrf.mxu0
  %v1606 = vadd.f32 %v1518, %v1605
  %v1607 = vpop.f32.mrf.mxu0
  %1608 = vmatprep.mubr.bf16.mxu0 0
  %1609 = vmatmul.mubr.bf16.gmra.mxu0 %v1482
  %v1610 = vpop.f32.mrf.mxu0
  %v1611 = vadd.f32 %v1518, %v1610
  %v1612 = vpop.f32.mrf.mxu0
  %v1613 = vpop.f32.mrf.mxu0
  %v1614 = vadd.f32 %v1518, %v1613
  %v1615 = vpop.f32.mrf.mxu0
  %1616 = vmatprep.mubr.bf16.mxu0 0
  %1617 = vmatmul.mubr.bf16.gmra.mxu0 %v1483
  %v1618 = vpop.f32.mrf.mxu0
  %v1619 = vadd.f32 %v1518, %v1618
  %v1620 = vpop.f32.mrf.mxu0
  %v1621 = vpop.f32.mrf.mxu0
  %v1622 = vadd.f32 %v1518, %v1621
  %v1623 = vpop.f32.mrf.mxu0
  %1624 = vmatprep.mubr.bf16.mxu0 0
  %1625 = vmatmul.mubr.bf16.gmra.mxu0 %v1484
  %v1626 = vpop.f32.mrf.mxu0
  %v1627 = vadd.f32 %v1518, %v1626
  %v1628 = vpop.f32.mrf.mxu0
  %v1629 = vpop.f32.mrf.mxu0
  %v1630 = vadd.f32 %v1518, %v1629
  %v1631 = vpop.f32.mrf.mxu0
  %1632 = vmatprep.mubr.bf16.mxu0 0
  %1633 = vmatmul.mubr.bf16.gmra.mxu0 %v1485
  %v1634 = vpop.f32.mrf.mxu0
  %v1635 = vadd.f32 %v1518, %v1634
  %v1636 = vpop.f32.mrf.mxu0
  %v1637 = vpop.f32.mrf.mxu0
  %v1638 = vadd.f32 %v1518, %v1637
  %v1639 = vpop.f32.mrf.mxu0
  %1640 = vmatprep.mubr.bf16.mxu0 0
  %1641 = vmatmul.mubr.bf16.gmra.mxu0 %v1486
  %v1642 = vpop.f32.mrf.mxu0
  %v1643 = vadd.f32 %v1518, %v1642
  %v1644 = vpop.f32.mrf.mxu0
  %v1645 = vpop.f32.mrf.mxu0
  %v1646 = vadd.f32 %v1518, %v1645
  %v1647 = vpop.f32.mrf.mxu0
  %1648 = vmatprep.mubr.bf16.mxu0 0
  %1649 = vmatmul.mubr.bf16.gmra.mxu0 %v1487
  %v1650 = vpop.f32.mrf.mxu0
  %v1651 = vadd.f32 %v1518, %v1650
  %v1652 = vpop.f32.mrf.mxu0
  %v1653 = vpop.f32.mrf.mxu0
  %v1654 = vadd.f32 %v1518, %v1653
  %v1655 = vpop.f32.mrf.mxu0
  %1656 = vmatprep.mubr.bf16.mxu0 0
  %1657 = vmatmul.mubr.bf16.gmra.mxu0 %v1488
  %v1658 = vpop.f32.mrf.mxu0
  %v1659 = vadd.f32 %v1518, %v1658
  %v1660 = vpop.f32.mrf.mxu0
  %v1661 = vpop.f32.mrf.mxu0
  %v1662 = vadd.f32 %v1518, %v1661
  %v1663 = vpop.f32.mrf.mxu0
  %1664 = vmatprep.mubr.bf16.mxu0 0
  %1665 = vmatmul.mubr.bf16.gmra.mxu0 %v1489
  %v1666 = vpop.f32.mrf.mxu0
  %v1667 = vadd.f32 %v1518, %v1666
  %v1668 = vpop.f32.mrf.mxu0
  %v1669 = vpop.f32.mrf.mxu0
  %v1670 = vadd.f32 %v1518, %v1669
  %v1671 = vpop.f32.mrf.mxu0
  %1672 = vmatprep.mubr.bf16.mxu0 0
  %1673 = vmatmul.mubr.bf16.gmra.mxu0 %v1490
  %v1674 = vpop.f32.mrf.mxu0
  %v1675 = vadd.f32 %v1518, %v1674
  %v1676 = vpop.f32.mrf.mxu0
  %v1677 = vpop.f32.mrf.mxu0
  %v1678 = vadd.f32 %v1518, %v1677
  %v1679 = vpop.f32.mrf.mxu0
  %1680 = vmatprep.mubr.bf16.mxu0 0
  %1681 = vmatmul.mubr.bf16.gmra.mxu0 %v1491
  %v1682 = vpop.f32.mrf.mxu0
  %v1683 = vadd.f32 %v1518, %v1682
  %v1684 = vpop.f32.mrf.mxu0
  %v1685 = vpop.f32.mrf.mxu0
  %v1686 = vadd.f32 %v1518, %v1685
  %v1687 = vpop.f32.mrf.mxu0
  %1688 = vmatprep.mubr.bf16.mxu0 0
  %1689 = vmatmul.mubr.bf16.gmra.mxu0 %v1492
  %v1690 = vpop.f32.mrf.mxu0
  %v1691 = vadd.f32 %v1518, %v1690
  %v1692 = vpop.f32.mrf.mxu0
  %v1693 = vpop.f32.mrf.mxu0
  %v1694 = vadd.f32 %v1518, %v1693
  %v1695 = vpop.f32.mrf.mxu0
  %1696 = vmatprep.mubr.bf16.mxu0 0
  %1697 = vmatmul.mubr.bf16.gmra.mxu0 %v1493
  %v1698 = vpop.f32.mrf.mxu0
  %v1699 = vadd.f32 %v1518, %v1698
  %v1700 = vpop.f32.mrf.mxu0
  %v1701 = vpop.f32.mrf.mxu0
  %v1702 = vadd.f32 %v1518, %v1701
  %v1703 = vpop.f32.mrf.mxu0
  %1704 = vmatprep.mubr.bf16.mxu0 0
  %1705 = vmatmul.mubr.bf16.gmra.mxu0 %v1494
  %v1706 = vpop.f32.mrf.mxu0
  %v1707 = vadd.f32 %v1518, %v1706
  %v1708 = vpop.f32.mrf.mxu0
  %v1709 = vpop.f32.mrf.mxu0
  %v1710 = vadd.f32 %v1518, %v1709
  %v1711 = vpop.f32.mrf.mxu0
  %1712 = vmatprep.mubr.bf16.mxu0 0
  %1713 = vmatmul.mubr.bf16.gmra.mxu0 %v1495
  %v1714 = vpop.f32.mrf.mxu0
  %v1715 = vadd.f32 %v1518, %v1714
  %v1716 = vpop.f32.mrf.mxu0
  %v1717 = vpop.f32.mrf.mxu0
  %v1718 = vadd.f32 %v1518, %v1717
  %v1719 = vpop.f32.mrf.mxu0
  %1720 = vmatprep.mubr.bf16.mxu0 0
  %1721 = vmatmul.mubr.bf16.gmra.mxu0 %v1496
  %v1722 = vpop.f32.mrf.mxu0
  %v1723 = vadd.f32 %v1518, %v1722
  %v1724 = vpop.f32.mrf.mxu0
  %v1725 = vpop.f32.mrf.mxu0
  %v1726 = vadd.f32 %v1518, %v1725
  %v1727 = vpop.f32.mrf.mxu0
  %1728 = vdwg.mxu0
  %1729 = vst [vmem:[%s5] sm:$0xff] %v1603
  %1730 = vst [vmem:[%s5 + $0x8] sm:$0xff] %v1606
  %1731 = vst [vmem:[%s5 + $0x10] sm:$0xff] %v1611
  %1732 = vst [vmem:[%s5 + $0x18] sm:$0xff] %v1614
  %1733 = vst [vmem:[%s5 + $0x20] sm:$0xff] %v1619
  %1734 = vst [vmem:[%s5 + $0x28] sm:$0xff] %v1622
  %1735 = vst [vmem:[%s5 + $0x30] sm:$0xff] %v1627
  %1736 = vst [vmem:[%s5 + $0x38] sm:$0xff] %v1630
  %1737 = vst [vmem:[%s5 + $0x40] sm:$0xff] %v1635
  %1738 = vst [vmem:[%s5 + $0x48] sm:$0xff] %v1638
  %1739 = vst [vmem:[%s5 + $0x50] sm:$0xff] %v1643
  %1740 = vst [vmem:[%s5 + $0x58] sm:$0xff] %v1646
  %1741 = vst [vmem:[%s5 + $0x60] sm:$0xff] %v1651
  %1742 = vst [vmem:[%s5 + $0x68] sm:$0xff] %v1654
  %1743 = vst [vmem:[%s5 + $0x70] sm:$0xff] %v1659
  %1744 = vst [vmem:[%s5 + $0x78] sm:$0xff] %v1662
  %1745 = vst [vmem:[%s5 + $0x80] sm:$0xff] %v1667
  %1746 = vst [vmem:[%s5 + $0x88] sm:$0xff] %v1670
  %1747 = vst [vmem:[%s5 + $0x90] sm:$0xff] %v1675
  %1748 = vst [vmem:[%s5 + $0x98] sm:$0xff] %v1678
  %1749 = vst [vmem:[%s5 + $0xa0] sm:$0xff] %v1683
  %1750 = vst [vmem:[%s5 + $0xa8] sm:$0xff] %v1686
  %1751 = vst [vmem:[%s5 + $0xb0] sm:$0xff] %v1691
  %1752 = vst [vmem:[%s5 + $0xb8] sm:$0xff] %v1694
  %1753 = vst [vmem:[%s5 + $0xc0] sm:$0xff] %v1699
  %1754 = vst [vmem:[%s5 + $0xc8] sm:$0xff] %v1702
  %1755 = vst [vmem:[%s5 + $0xd0] sm:$0xff] %v1707
  %1756 = vst [vmem:[%s5 + $0xd8] sm:$0xff] %v1710
  %1757 = vst [vmem:[%s5 + $0xe0] sm:$0xff] %v1715
  %1758 = vst [vmem:[%s5 + $0xe8] sm:$0xff] %v1718
  %1759 = vst [vmem:[%s5 + $0xf0] sm:$0xff] %v1723
  %1760 = vst [vmem:[%s5 + $0xf8] sm:$0xff] %v1726
  // Predicated region
  $region22: #{mlp_forward.1} parent=0 // pred_check
    _
  $region23: #{mlp_forward.1} parent=0 // pred_check_branch
    %1762 = sbr.rel (0) target = $region25
  $region24: #{mlp_forward.1} parent=0 // pred_region
    _
  $region25: #{mlp_forward.1} parent=0 // pred_fallthru
    _
  // Predicated region
  $region26: #{mlp_forward.1} parent=0 // pred_check
    _
  $region27: #{mlp_forward.1} parent=0 // pred_check_branch
    %1764 = sbr.rel (0) target = $region29
  $region28: #{mlp_forward.1} parent=0 // pred_region
    _
  $region29: #{mlp_forward.1} parent=0 // pred_fallthru
    _

</llo_original>
